<compile_context>
chip_gen: v7x
topology: tpu7x:2x2x1
jax: 0.10.0
libtpu: 0.0.40
codegen_flags: <defaults>
</compile_context>

<pallas_src>
import jax
import jax.numpy as jnp
from jax import lax
from jax.experimental import pallas as pl
from jax.experimental.pallas import tpu as pltpu

T_DIM = 512
C_DIM = 512


def _default_num_tiles():
    # v7x has 2 TensorCores per chip -> 2 parallel column tiles; v5e/v6e have 1.
    try:
        kind = jax.devices()[0].device_kind.lower()
        if "v7" in kind or "7x" in kind:
            return 2
    except Exception:
        pass
    return 1


def ca_net_kernel(x_ref, w_ref, b_ref, eps_ref, c_ref, mu_ref, lv_ref):
    x = x_ref[...]                                   # (B, T_DIM) f32
    # Weight halves are in torch Linear layout (out_features, in_features),
    # possibly stored bf16: upcast in VMEM, contract x dim 1 with w dim 1,
    # i.e. x @ w.T -- the MXU handles the transposed operand natively.
    dn = (((1,), (1,)), ((), ()))
    w_mu = w_ref[0].astype(jnp.float32)              # (tn, T_DIM)
    w_lv = w_ref[1].astype(jnp.float32)              # (tn, T_DIM)
    mu = lax.dot_general(x, w_mu, dn, preferred_element_type=jnp.float32)
    lv = lax.dot_general(x, w_lv, dn, preferred_element_type=jnp.float32)
    mu = jnp.maximum(mu + b_ref[0], 0.0)             # ReLU(fc) -- mu half
    lv = jnp.maximum(lv + b_ref[1], 0.0)             # ReLU(fc) -- logvar half
    c_ref[...] = eps_ref[...] * jnp.exp(0.5 * lv) + mu
    mu_ref[...] = mu
    lv_ref[...] = lv


def ca_net_forward(x, w, b, eps, *, num_tiles=None):
    """x: (B, T_DIM) f32; w: (2*C_DIM, T_DIM) torch Linear layout (f32 or bf16);
    b: (2*C_DIM,); eps: (B, C_DIM) f32 reparametrization noise.
    Returns (c_code, mu, logvar), each (B, C_DIM) f32."""
    B = x.shape[0]
    if num_tiles is None:
        num_tiles = _default_num_tiles()
    tn = C_DIM // num_tiles

    # Pure leading-dim splits: bitcast-level reshapes, no transpose / no copy.
    w3 = w.reshape(2, C_DIM, T_DIM)
    b3 = b.reshape(2, 1, C_DIM).astype(jnp.float32)

    out_sds = jax.ShapeDtypeStruct((B, C_DIM), jnp.float32)

    return pl.pallas_call(
        ca_net_kernel,
        out_shape=(out_sds, out_sds, out_sds),
        grid_spec=pltpu.PrefetchScalarGridSpec(
            num_scalar_prefetch=0,
            grid=(num_tiles,),
            in_specs=[
                pl.BlockSpec((B, T_DIM), lambda j: (0, 0)),         # x (resident)
                pl.BlockSpec((2, tn, T_DIM), lambda j: (0, j, 0)),  # fused W tile
                pl.BlockSpec((2, 1, tn), lambda j: (0, 0, j)),      # fused bias tile
                pl.BlockSpec((B, tn), lambda j: (0, j)),            # eps
            ],
            out_specs=[
                pl.BlockSpec((B, tn), lambda j: (0, j)),            # c_code
                pl.BlockSpec((B, tn), lambda j: (0, j)),            # mu
                pl.BlockSpec((B, tn), lambda j: (0, j)),            # logvar
            ],
        ),
        compiler_params=pltpu.CompilerParams(
            dimension_semantics=("parallel",)),
    )(x, w3, b3, eps)


if __name__ == "__main__":
    key = jax.random.PRNGKey(0)
    k_x, k_w, k_b, k_eps = jax.random.split(key, 4)

    B = 8
    # Deterministic "PyTorch-like" Linear init: U(-1/sqrt(fan_in), 1/sqrt(fan_in)).
    bound = 1.0 / (T_DIM ** 0.5)
    w_f32 = jax.random.uniform(k_w, (2 * C_DIM, T_DIM), jnp.float32, -bound, bound)
    b = jax.random.uniform(k_b, (2 * C_DIM,), jnp.float32, -bound, bound)
    # Store the FC weight in bf16 once at "parameter init" time: halves the
    # dominant weight-HBM traffic; the kernel upcasts and computes in f32.
    w = w_f32.astype(jnp.bfloat16)

    x = jax.random.normal(k_x, (B, T_DIM), jnp.float32)
    # Reparametrization noise supplied externally (stands in for the module's
    # torch.cuda.FloatTensor(...).normal_()).
    eps = jax.random.normal(k_eps, (B, C_DIM), jnp.float32)

    fwd = jax.jit(ca_net_forward)
    c_code, mu, logvar = fwd(x, w, b, eps)
    jax.block_until_ready((c_code, mu, logvar))

    # Pure-JAX reference using the same bf16-stored weight (f32 math).
    w_ref = w.astype(jnp.float32)
    ref = jnp.maximum(x @ w_ref.T + b, 0.0)
    mu_ref, lv_ref = ref[:, :C_DIM], ref[:, C_DIM:]
    c_ref = eps * jnp.exp(0.5 * lv_ref) + mu_ref
    assert jnp.allclose(mu, mu_ref, atol=2e-4, rtol=2e-4)
    assert jnp.allclose(logvar, lv_ref, atol=2e-4, rtol=2e-4)
    assert jnp.allclose(c_code, c_ref, atol=2e-4, rtol=2e-4)

    print("KERNEL_OK")
</pallas_src>

<mosaic_0001>
module attributes {stable_mosaic.version = 11 : i64} {
  func.func @ca_net_kernel(%arg0: i32, %arg1: memref<8x512xf32, #tpu.memory_space<vmem>>, %arg2: memref<2x512x512xbf16, #tpu.memory_space<vmem>>, %arg3: memref<2x1x512xf32, #tpu.memory_space<vmem>>, %arg4: memref<8x512xf32, #tpu.memory_space<vmem>>, %arg5: memref<8x512xf32, #tpu.memory_space<vmem>>, %arg6: memref<8x512xf32, #tpu.memory_space<vmem>>, %arg7: memref<8x512xf32, #tpu.memory_space<vmem>>) attributes {dimension_semantics = [#tpu.dimension_semantics<parallel>], iteration_bounds = array<i64: 1>, scalar_prefetch = 0 : i64, scratch_operands = 0 : i64, tpu.core_type = #tpu.core_type<tc>, window_params = [{pipeline_mode = #tpu.pipeline_mode<synchronous>, transform_indices = @transform_0, window_bounds = array<i64: 8, 512>}, {transform_indices = @transform_1, window_bounds = array<i64: 2, 512, 512>}, {transform_indices = @transform_2, window_bounds = array<i64: 2, 1, 512>}, {transform_indices = @transform_3, window_bounds = array<i64: 8, 512>}, {transform_indices = @transform_4, window_bounds = array<i64: 8, 512>}, {transform_indices = @transform_5, window_bounds = array<i64: 8, 512>}, {transform_indices = @transform_6, window_bounds = array<i64: 8, 512>}]} {
    %c0 = arith.constant 0 : index
    %c0_0 = arith.constant 0 : index
    %0 = vector.load %arg1[%c0, %c0_0] : memref<8x512xf32, #tpu.memory_space<vmem>>, vector<8x512xf32>
    %c0_1 = arith.constant 0 : index
    %c0_2 = arith.constant 0 : index
    %c0_3 = arith.constant 0 : index
    %1 = vector.load %arg2[%c0_1, %c0_2, %c0_3] : memref<2x512x512xbf16, #tpu.memory_space<vmem>>, vector<1x512x512xbf16>
    %2 = vector.shape_cast %1 : vector<1x512x512xbf16> to vector<512x512xbf16>
    %3 = arith.extf %2 : vector<512x512xbf16> to vector<512x512xf32>
    %c1 = arith.constant 1 : index
    %c0_4 = arith.constant 0 : index
    %c0_5 = arith.constant 0 : index
    %4 = vector.load %arg2[%c1, %c0_4, %c0_5] : memref<2x512x512xbf16, #tpu.memory_space<vmem>>, vector<1x512x512xbf16>
    %5 = vector.shape_cast %4 : vector<1x512x512xbf16> to vector<512x512xbf16>
    %6 = arith.extf %5 : vector<512x512xbf16> to vector<512x512xf32>
    %cst = arith.constant dense<0.000000e+00> : vector<8x512xf32>
    %7 = tpu.matmul %0, %3, %cst {dimension_numbers = #tpu.dot_dimension_numbers<[1], [1], [0], [0], [0, 0, 1, 0], [], []>} : vector<8x512xf32>, vector<512x512xf32>, vector<8x512xf32> -> vector<8x512xf32>
    %cst_6 = arith.constant dense<0.000000e+00> : vector<8x512xf32>
    %8 = tpu.matmul %0, %6, %cst_6 {dimension_numbers = #tpu.dot_dimension_numbers<[1], [1], [0], [0], [0, 0, 1, 0], [], []>} : vector<8x512xf32>, vector<512x512xf32>, vector<8x512xf32> -> vector<8x512xf32>
    %c0_7 = arith.constant 0 : index
    %c0_8 = arith.constant 0 : index
    %c0_9 = arith.constant 0 : index
    %9 = vector.load %arg3[%c0_7, %c0_8, %c0_9] : memref<2x1x512xf32, #tpu.memory_space<vmem>>, vector<1x1x512xf32>
    %10 = vector.shape_cast %9 : vector<1x1x512xf32> to vector<1x512xf32>
    %11 = vector.broadcast %10 : vector<1x512xf32> to vector<8x512xf32>
    %12 = arith.addf %7, %11 : vector<8x512xf32>
    %cst_10 = arith.constant 0.000000e+00 : f32
    %13 = vector.broadcast %cst_10 : f32 to vector<8x512xf32>
    %14 = arith.maximumf %12, %13 : vector<8x512xf32>
    %c1_11 = arith.constant 1 : index
    %c0_12 = arith.constant 0 : index
    %c0_13 = arith.constant 0 : index
    %15 = vector.load %arg3[%c1_11, %c0_12, %c0_13] : memref<2x1x512xf32, #tpu.memory_space<vmem>>, vector<1x1x512xf32>
    %16 = vector.shape_cast %15 : vector<1x1x512xf32> to vector<1x512xf32>
    %17 = vector.broadcast %16 : vector<1x512xf32> to vector<8x512xf32>
    %18 = arith.addf %8, %17 : vector<8x512xf32>
    %cst_14 = arith.constant 0.000000e+00 : f32
    %19 = vector.broadcast %cst_14 : f32 to vector<8x512xf32>
    %20 = arith.maximumf %18, %19 : vector<8x512xf32>
    %c0_15 = arith.constant 0 : index
    %c0_16 = arith.constant 0 : index
    %21 = vector.load %arg4[%c0_15, %c0_16] : memref<8x512xf32, #tpu.memory_space<vmem>>, vector<8x512xf32>
    %cst_17 = arith.constant 5.000000e-01 : f32
    %22 = vector.broadcast %cst_17 : f32 to vector<8x512xf32>
    %23 = arith.mulf %22, %20 : vector<8x512xf32>
    %24 = math.exp %23 : vector<8x512xf32>
    %25 = arith.mulf %21, %24 : vector<8x512xf32>
    %26 = arith.addf %25, %14 : vector<8x512xf32>
    %c0_18 = arith.constant 0 : index
    %c0_19 = arith.constant 0 : index
    %27 = vector.load %arg5[%c0_18, %c0_19] : memref<8x512xf32, #tpu.memory_space<vmem>>, vector<8x512xf32>
    tpu.vector_store %arg5[%c0_18, %c0_19], %26 {strides = array<i32>} : memref<8x512xf32, #tpu.memory_space<vmem>>, vector<8x512xf32>,
    %c0_20 = arith.constant 0 : index
    %c0_21 = arith.constant 0 : index
    %28 = vector.load %arg6[%c0_20, %c0_21] : memref<8x512xf32, #tpu.memory_space<vmem>>, vector<8x512xf32>
    tpu.vector_store %arg6[%c0_20, %c0_21], %14 {strides = array<i32>} : memref<8x512xf32, #tpu.memory_space<vmem>>, vector<8x512xf32>,
    %c0_22 = arith.constant 0 : index
    %c0_23 = arith.constant 0 : index
    %29 = vector.load %arg7[%c0_22, %c0_23] : memref<8x512xf32, #tpu.memory_space<vmem>>, vector<8x512xf32>
    tpu.vector_store %arg7[%c0_22, %c0_23], %20 {strides = array<i32>} : memref<8x512xf32, #tpu.memory_space<vmem>>, vector<8x512xf32>,
    return
  }
  func.func @transform_0(%arg0: i32) -> (i32, i32) {
    %c0_i32 = arith.constant 0 : i32
    %c0_i32_0 = arith.constant 0 : i32
    %c0_i32_1 = arith.constant 0 : i32
    return %c0_i32, %c0_i32_0 : i32, i32
  }
  func.func @transform_1(%arg0: i32) -> (i32, i32, i32) {
    %c0_i32 = arith.constant 0 : i32
    %c0_i32_0 = arith.constant 0 : i32
    %c0_i32_1 = arith.constant 0 : i32
    return %c0_i32, %arg0, %c0_i32_0 : i32, i32, i32
  }
  func.func @transform_2(%arg0: i32) -> (i32, i32, i32) {
    %c0_i32 = arith.constant 0 : i32
    %c0_i32_0 = arith.constant 0 : i32
    %c0_i32_1 = arith.constant 0 : i32
    return %c0_i32, %c0_i32_0, %arg0 : i32, i32, i32
  }
  func.func @transform_3(%arg0: i32) -> (i32, i32) {
    %c0_i32 = arith.constant 0 : i32
    %c0_i32_0 = arith.constant 0 : i32
    return %c0_i32, %arg0 : i32, i32
  }
  func.func @transform_4(%arg0: i32) -> (i32, i32) {
    %c0_i32 = arith.constant 0 : i32
    %c0_i32_0 = arith.constant 0 : i32
    return %c0_i32, %arg0 : i32, i32
  }
  func.func @transform_5(%arg0: i32) -> (i32, i32) {
    %c0_i32 = arith.constant 0 : i32
    %c0_i32_0 = arith.constant 0 : i32
    return %c0_i32, %arg0 : i32, i32
  }
  func.func @transform_6(%arg0: i32) -> (i32, i32) {
    %c0_i32 = arith.constant 0 : i32
    %c0_i32_0 = arith.constant 0 : i32
    return %c0_i32, %arg0 : i32, i32
  }
}

</mosaic_0001>

<llo_original>
// kernel: ca_net_forward.1
$region0: #{ca_net_forward.1}
  #allocation0 [shape = 'u32[]', space=smem, size = 0x4, offset = 0x4, fixed_abs, tag = 'smem constant byte address 0x4 - core index']
  #allocation1 [shape = 'u32[144,128]{1,0:T(1,128)}', space=vmem, size = 0x12000, scoped, tag = 'internal scratch']
  %s0 = inlined_call_operand.hbm [shape: f32[8,512], index: 0, kind: input, shape index: {}]
  %s1 = inlined_call_operand.hbm [shape: bf16[2,512,512], index: 1, kind: input, shape index: {}]
  %s2 = inlined_call_operand.vmem [shape: f32[2,1,512], index: 2, kind: input, shape index: {}]
  %s3 = inlined_call_operand.hbm [shape: f32[8,512], index: 3, kind: input, shape index: {}]
  %s4 = inlined_call_operand.hbm [shape: f32[8,512], index: 4, kind: output, shape index: {0}]
  %s5 = inlined_call_operand.hbm [shape: f32[8,512], index: 5, kind: output, shape index: {1}]
  %s6 = inlined_call_operand.hbm [shape: f32[8,512], index: 6, kind: output, shape index: {2}]
  %7 = xla_tuple %s4, %s5, %s6
  %s8 = sld [smem:[#allocation0]]
  $region54: #{ca_net_forward.1} parent=0
    _
  %s10 = ssub.s32 1, %s8
  %s11 = scalar_select 0, %s10, %s8
  $region1: #{ca_net_forward.1} parent=0
    #allocation2 [shape = 'u8[16384]{0}', space=vmem, size = 0x4000, scoped, tag = 'input window, operand 0, single buffered']
    #allocation3 [shape = 's32[1]{0}', space=sflag, size = 0x4, scoped, tag = 'scoped memory for ca_net_forward.1']
    #allocation4 [shape = 's32[1]{0}', space=sflag, size = 0x4, scoped, tag = 'scoped memory for ca_net_forward.1']
    #allocation5 [shape = 'u8[1048576]{0}', space=vmem, size = 0x100000, scoped, tag = 'input window, operand 1, single buffered']
    #allocation6 [shape = 's32[1]{0}', space=sflag, size = 0x4, scoped, tag = 'scoped memory for ca_net_forward.1']
    #allocation7 [shape = 'u8[16384]{0}', space=vmem, size = 0x4000, scoped, tag = 'input window, operand 3, single buffered']
    #allocation8 [shape = 'u8[16384]{0}', space=vmem, size = 0x4000, scoped, tag = 'output window, operand 0, single buffered']
    #allocation9 [shape = 'u8[16384]{0}', space=vmem, size = 0x4000, scoped, tag = 'output window, operand 1, single buffered']
    #allocation10 [shape = 's32[1]{0}', space=sflag, size = 0x4, scoped, tag = 'scoped memory for ca_net_forward.1']
    #allocation11 [shape = 'u8[16384]{0}', space=vmem, size = 0x4000, scoped, tag = 'output window, operand 2, single buffered']
    %12 = vsyncpa [#allocation3], 0
    %13 = vsyncpa [#allocation6], 0
    %14 = vsyncpa [#allocation4], 0
    %15 = vsyncpa [#allocation10], 0
    // Predicated region
    $region2: #{ca_net_forward.1} parent=1 // pred_check
      _
    $region3: #{ca_net_forward.1} parent=1 // pred_check_branch
      %17 = sbr.rel (0) target = $region5
    $region4: #{ca_net_forward.1} parent=1 // pred_region
      %s19 = ssub.s32 512, 512
      %20 = vsyncadd [#allocation3], %s19
      %s22 = sshll.u32 [#allocation2], 4
      %s23 = int_to_ptr.vmem [resolvable:$true] %s22
      %25 = dma.hbm_to_vmem [thread:$0]  %s0, 512, %s23, [#allocation3]
    $region5: #{ca_net_forward.1} parent=1 // pred_fallthru
      _
    // Predicated region
    $region6: #{ca_net_forward.1} parent=1 // pred_check
      _
    $region7: #{ca_net_forward.1} parent=1 // pred_check_branch
      %27 = sbr.rel (0) target = $region9
    $region8: #{ca_net_forward.1} parent=1 // pred_region
      %s29 = ssub.s32 32768, 32768
      %30 = vsyncadd [#allocation6], %s29
      %s31 = sshll.u32 [#allocation5], 4
      %s32 = int_to_ptr.vmem [resolvable:$true] %s31
      %37 = dma.hbm_to_vmem [thread:$0]  %s1, 32768, %s32, [#allocation6], 256, 256, 16
    $region9: #{ca_net_forward.1} parent=1 // pred_fallthru
      _
    // Predicated region
    $region10: #{ca_net_forward.1} parent=1 // pred_check
      _
    $region11: #{ca_net_forward.1} parent=1 // pred_check_branch
      %39 = sbr.rel (0) target = $region13
    $region12: #{ca_net_forward.1} parent=1 // pred_region
      _
    $region13: #{ca_net_forward.1} parent=1 // pred_fallthru
      _
    // Predicated region
    $region14: #{ca_net_forward.1} parent=1 // pred_check
      _
    $region15: #{ca_net_forward.1} parent=1 // pred_check_branch
      %41 = sbr.rel (0) target = $region17
    $region16: #{ca_net_forward.1} parent=1 // pred_region
      %s43 = ssub.s32 512, 512
      %44 = vsyncadd [#allocation6], %s43
      %s46 = sshll.u32 [#allocation7], 4
      %s47 = int_to_ptr.vmem [resolvable:$true] %s46
      %49 = dma.hbm_to_vmem [thread:$0]  %s3, 512, %s47, [#allocation6]
    $region17: #{ca_net_forward.1} parent=1 // pred_fallthru
      _
    // Predicated region
    $region18: #{ca_net_forward.1} parent=1 // pred_check
      _
    $region19: #{ca_net_forward.1} parent=1 // pred_check_branch
      %51 = sbr.rel (0) target = $region21
    $region20: #{ca_net_forward.1} parent=1 // pred_region
      %52 = dma.done [#allocation3], 512
    $region21: #{ca_net_forward.1} parent=1 // pred_fallthru
      _
    // Predicated region
    $region22: #{ca_net_forward.1} parent=1 // pred_check
      _
    $region23: #{ca_net_forward.1} parent=1 // pred_check_branch
      %54 = sbr.rel (0) target = $region25
    $region24: #{ca_net_forward.1} parent=1 // pred_region
      %55 = dma.done [#allocation6], 32768
    $region25: #{ca_net_forward.1} parent=1 // pred_fallthru
      _
    // Predicated region
    $region26: #{ca_net_forward.1} parent=1 // pred_check
      _
    $region27: #{ca_net_forward.1} parent=1 // pred_check_branch
      %57 = sbr.rel (0) target = $region29
    $region28: #{ca_net_forward.1} parent=1 // pred_region
      %58 = dma.done [#allocation6], 512
    $region29: #{ca_net_forward.1} parent=1 // pred_fallthru
      _
    %v59 = vld [vmem:[#allocation2] sm:$0xff]
    %v60 = vld [vmem:[#allocation2 + $0x8] sm:$0xff]
    %v61 = vld [vmem:[#allocation2 + $0x10] sm:$0xff]
    %v62 = vld [vmem:[#allocation2 + $0x18] sm:$0xff]
    %v63 = vld [vmem:[#allocation5] sm:$0xff]
    %v64 = vld [vmem:[#allocation5 + $0x8] sm:$0xff]
    %v65 = vld [vmem:[#allocation5 + $0x10] sm:$0xff]
    %v66 = vld [vmem:[#allocation5 + $0x18] sm:$0xff]
    %v67 = vld [vmem:[#allocation5 + $0x20] sm:$0xff]
    %v68 = vld [vmem:[#allocation5 + $0x28] sm:$0xff]
    %v69 = vld [vmem:[#allocation5 + $0x30] sm:$0xff]
    %v70 = vld [vmem:[#allocation5 + $0x38] sm:$0xff]
    %v71 = vld [vmem:[#allocation5 + $0x40] sm:$0xff]
    %v72 = vld [vmem:[#allocation5 + $0x48] sm:$0xff]
    %v73 = vld [vmem:[#allocation5 + $0x50] sm:$0xff]
    %v74 = vld [vmem:[#allocation5 + $0x58] sm:$0xff]
    %v75 = vld [vmem:[#allocation5 + $0x60] sm:$0xff]
    %v76 = vld [vmem:[#allocation5 + $0x68] sm:$0xff]
    %v77 = vld [vmem:[#allocation5 + $0x70] sm:$0xff]
    %v78 = vld [vmem:[#allocation5 + $0x78] sm:$0xff]
    %v79 = vld [vmem:[#allocation5 + $0x80] sm:$0xff]
    %v80 = vld [vmem:[#allocation5 + $0x88] sm:$0xff]
    %v81 = vld [vmem:[#allocation5 + $0x90] sm:$0xff]
    %v82 = vld [vmem:[#allocation5 + $0x98] sm:$0xff]
    %v83 = vld [vmem:[#allocation5 + $0xa0] sm:$0xff]
    %v84 = vld [vmem:[#allocation5 + $0xa8] sm:$0xff]
    %v85 = vld [vmem:[#allocation5 + $0xb0] sm:$0xff]
    %v86 = vld [vmem:[#allocation5 + $0xb8] sm:$0xff]
    %v87 = vld [vmem:[#allocation5 + $0xc0] sm:$0xff]
    %v88 = vld [vmem:[#allocation5 + $0xc8] sm:$0xff]
    %v89 = vld [vmem:[#allocation5 + $0xd0] sm:$0xff]
    %v90 = vld [vmem:[#allocation5 + $0xd8] sm:$0xff]
    %v91 = vld [vmem:[#allocation5 + $0xe0] sm:$0xff]
    %v92 = vld [vmem:[#allocation5 + $0xe8] sm:$0xff]
    %v93 = vld [vmem:[#allocation5 + $0xf0] sm:$0xff]
    %v94 = vld [vmem:[#allocation5 + $0xf8] sm:$0xff]
    %v95 = vld [vmem:[#allocation5 + $0x100] sm:$0xff]
    %v96 = vld [vmem:[#allocation5 + $0x108] sm:$0xff]
    %v97 = vld [vmem:[#allocation5 + $0x110] sm:$0xff]
    %v98 = vld [vmem:[#allocation5 + $0x118] sm:$0xff]
    %v99 = vld [vmem:[#allocation5 + $0x120] sm:$0xff]
    %v100 = vld [vmem:[#allocation5 + $0x128] sm:$0xff]
    %v101 = vld [vmem:[#allocation5 + $0x130] sm:$0xff]
    %v102 = vld [vmem:[#allocation5 + $0x138] sm:$0xff]
    %v103 = vld [vmem:[#allocation5 + $0x140] sm:$0xff]
    %v104 = vld [vmem:[#allocation5 + $0x148] sm:$0xff]
    %v105 = vld [vmem:[#allocation5 + $0x150] sm:$0xff]
    %v106 = vld [vmem:[#allocation5 + $0x158] sm:$0xff]
    %v107 = vld [vmem:[#allocation5 + $0x160] sm:$0xff]
    %v108 = vld [vmem:[#allocation5 + $0x168] sm:$0xff]
    %v109 = vld [vmem:[#allocation5 + $0x170] sm:$0xff]
    %v110 = vld [vmem:[#allocation5 + $0x178] sm:$0xff]
    %v111 = vld [vmem:[#allocation5 + $0x180] sm:$0xff]
    %v112 = vld [vmem:[#allocation5 + $0x188] sm:$0xff]
    %v113 = vld [vmem:[#allocation5 + $0x190] sm:$0xff]
    %v114 = vld [vmem:[#allocation5 + $0x198] sm:$0xff]
    %v115 = vld [vmem:[#allocation5 + $0x1a0] sm:$0xff]
    %v116 = vld [vmem:[#allocation5 + $0x1a8] sm:$0xff]
    %v117 = vld [vmem:[#allocation5 + $0x1b0] sm:$0xff]
    %v118 = vld [vmem:[#allocation5 + $0x1b8] sm:$0xff]
    %v119 = vld [vmem:[#allocation5 + $0x1c0] sm:$0xff]
    %v120 = vld [vmem:[#allocation5 + $0x1c8] sm:$0xff]
    %v121 = vld [vmem:[#allocation5 + $0x1d0] sm:$0xff]
    %v122 = vld [vmem:[#allocation5 + $0x1d8] sm:$0xff]
    %v123 = vld [vmem:[#allocation5 + $0x1e0] sm:$0xff]
    %v124 = vld [vmem:[#allocation5 + $0x1e8] sm:$0xff]
    %v125 = vld [vmem:[#allocation5 + $0x1f0] sm:$0xff]
    %v126 = vld [vmem:[#allocation5 + $0x1f8] sm:$0xff]
    %v127 = vld [vmem:[#allocation5 + $0x200] sm:$0xff]
    %v128 = vld [vmem:[#allocation5 + $0x208] sm:$0xff]
    %v129 = vld [vmem:[#allocation5 + $0x210] sm:$0xff]
    %v130 = vld [vmem:[#allocation5 + $0x218] sm:$0xff]
    %v131 = vld [vmem:[#allocation5 + $0x220] sm:$0xff]
    %v132 = vld [vmem:[#allocation5 + $0x228] sm:$0xff]
    %v133 = vld [vmem:[#allocation5 + $0x230] sm:$0xff]
    %v134 = vld [vmem:[#allocation5 + $0x238] sm:$0xff]
    %v135 = vld [vmem:[#allocation5 + $0x240] sm:$0xff]
    %v136 = vld [vmem:[#allocation5 + $0x248] sm:$0xff]
    %v137 = vld [vmem:[#allocation5 + $0x250] sm:$0xff]
    %v138 = vld [vmem:[#allocation5 + $0x258] sm:$0xff]
    %v139 = vld [vmem:[#allocation5 + $0x260] sm:$0xff]
    %v140 = vld [vmem:[#allocation5 + $0x268] sm:$0xff]
    %v141 = vld [vmem:[#allocation5 + $0x270] sm:$0xff]
    %v142 = vld [vmem:[#allocation5 + $0x278] sm:$0xff]
    %v143 = vld [vmem:[#allocation5 + $0x280] sm:$0xff]
    %v144 = vld [vmem:[#allocation5 + $0x288] sm:$0xff]
    %v145 = vld [vmem:[#allocation5 + $0x290] sm:$0xff]
    %v146 = vld [vmem:[#allocation5 + $0x298] sm:$0xff]
    %v147 = vld [vmem:[#allocation5 + $0x2a0] sm:$0xff]
    %v148 = vld [vmem:[#allocation5 + $0x2a8] sm:$0xff]
    %v149 = vld [vmem:[#allocation5 + $0x2b0] sm:$0xff]
    %v150 = vld [vmem:[#allocation5 + $0x2b8] sm:$0xff]
    %v151 = vld [vmem:[#allocation5 + $0x2c0] sm:$0xff]
    %v152 = vld [vmem:[#allocation5 + $0x2c8] sm:$0xff]
    %v153 = vld [vmem:[#allocation5 + $0x2d0] sm:$0xff]
    %v154 = vld [vmem:[#allocation5 + $0x2d8] sm:$0xff]
    %v155 = vld [vmem:[#allocation5 + $0x2e0] sm:$0xff]
    %v156 = vld [vmem:[#allocation5 + $0x2e8] sm:$0xff]
    %v157 = vld [vmem:[#allocation5 + $0x2f0] sm:$0xff]
    %v158 = vld [vmem:[#allocation5 + $0x2f8] sm:$0xff]
    %v159 = vld [vmem:[#allocation5 + $0x300] sm:$0xff]
    %v160 = vld [vmem:[#allocation5 + $0x308] sm:$0xff]
    %v161 = vld [vmem:[#allocation5 + $0x310] sm:$0xff]
    %v162 = vld [vmem:[#allocation5 + $0x318] sm:$0xff]
    %v163 = vld [vmem:[#allocation5 + $0x320] sm:$0xff]
    %v164 = vld [vmem:[#allocation5 + $0x328] sm:$0xff]
    %v165 = vld [vmem:[#allocation5 + $0x330] sm:$0xff]
    %v166 = vld [vmem:[#allocation5 + $0x338] sm:$0xff]
    %v167 = vld [vmem:[#allocation5 + $0x340] sm:$0xff]
    %v168 = vld [vmem:[#allocation5 + $0x348] sm:$0xff]
    %v169 = vld [vmem:[#allocation5 + $0x350] sm:$0xff]
    %v170 = vld [vmem:[#allocation5 + $0x358] sm:$0xff]
    %v171 = vld [vmem:[#allocation5 + $0x360] sm:$0xff]
    %v172 = vld [vmem:[#allocation5 + $0x368] sm:$0xff]
    %v173 = vld [vmem:[#allocation5 + $0x370] sm:$0xff]
    %v174 = vld [vmem:[#allocation5 + $0x378] sm:$0xff]
    %v175 = vld [vmem:[#allocation5 + $0x380] sm:$0xff]
    %v176 = vld [vmem:[#allocation5 + $0x388] sm:$0xff]
    %v177 = vld [vmem:[#allocation5 + $0x390] sm:$0xff]
    %v178 = vld [vmem:[#allocation5 + $0x398] sm:$0xff]
    %v179 = vld [vmem:[#allocation5 + $0x3a0] sm:$0xff]
    %v180 = vld [vmem:[#allocation5 + $0x3a8] sm:$0xff]
    %v181 = vld [vmem:[#allocation5 + $0x3b0] sm:$0xff]
    %v182 = vld [vmem:[#allocation5 + $0x3b8] sm:$0xff]
    %v183 = vld [vmem:[#allocation5 + $0x3c0] sm:$0xff]
    %v184 = vld [vmem:[#allocation5 + $0x3c8] sm:$0xff]
    %v185 = vld [vmem:[#allocation5 + $0x3d0] sm:$0xff]
    %v186 = vld [vmem:[#allocation5 + $0x3d8] sm:$0xff]
    %v187 = vld [vmem:[#allocation5 + $0x3e0] sm:$0xff]
    %v188 = vld [vmem:[#allocation5 + $0x3e8] sm:$0xff]
    %v189 = vld [vmem:[#allocation5 + $0x3f0] sm:$0xff]
    %v190 = vld [vmem:[#allocation5 + $0x3f8] sm:$0xff]
    %v191 = vunpack.c.l.bf16 %v63
    %v192 = vunpack.c.h.bf16 %v63
    %v193 = vunpack.c.l.bf16 %v64
    %v194 = vunpack.c.h.bf16 %v64
    %v195 = vunpack.c.l.bf16 %v65
    %v196 = vunpack.c.h.bf16 %v65
    %v197 = vunpack.c.l.bf16 %v66
    %v198 = vunpack.c.h.bf16 %v66
    %v199 = vunpack.c.l.bf16 %v67
    %v200 = vunpack.c.h.bf16 %v67
    %v201 = vunpack.c.l.bf16 %v68
    %v202 = vunpack.c.h.bf16 %v68
    %v203 = vunpack.c.l.bf16 %v69
    %v204 = vunpack.c.h.bf16 %v69
    %v205 = vunpack.c.l.bf16 %v70
    %v206 = vunpack.c.h.bf16 %v70
    %v207 = vunpack.c.l.bf16 %v71
    %v208 = vunpack.c.h.bf16 %v71
    %v209 = vunpack.c.l.bf16 %v72
    %v210 = vunpack.c.h.bf16 %v72
    %v211 = vunpack.c.l.bf16 %v73
    %v212 = vunpack.c.h.bf16 %v73
    %v213 = vunpack.c.l.bf16 %v74
    %v214 = vunpack.c.h.bf16 %v74
    %v215 = vunpack.c.l.bf16 %v75
    %v216 = vunpack.c.h.bf16 %v75
    %v217 = vunpack.c.l.bf16 %v76
    %v218 = vunpack.c.h.bf16 %v76
    %v219 = vunpack.c.l.bf16 %v77
    %v220 = vunpack.c.h.bf16 %v77
    %v221 = vunpack.c.l.bf16 %v78
    %v222 = vunpack.c.h.bf16 %v78
    %v223 = vunpack.c.l.bf16 %v79
    %v224 = vunpack.c.h.bf16 %v79
    %v225 = vunpack.c.l.bf16 %v80
    %v226 = vunpack.c.h.bf16 %v80
    %v227 = vunpack.c.l.bf16 %v81
    %v228 = vunpack.c.h.bf16 %v81
    %v229 = vunpack.c.l.bf16 %v82
    %v230 = vunpack.c.h.bf16 %v82
    %v231 = vunpack.c.l.bf16 %v83
    %v232 = vunpack.c.h.bf16 %v83
    %v233 = vunpack.c.l.bf16 %v84
    %v234 = vunpack.c.h.bf16 %v84
    %v235 = vunpack.c.l.bf16 %v85
    %v236 = vunpack.c.h.bf16 %v85
    %v237 = vunpack.c.l.bf16 %v86
    %v238 = vunpack.c.h.bf16 %v86
    %v239 = vunpack.c.l.bf16 %v87
    %v240 = vunpack.c.h.bf16 %v87
    %v241 = vunpack.c.l.bf16 %v88
    %v242 = vunpack.c.h.bf16 %v88
    %v243 = vunpack.c.l.bf16 %v89
    %v244 = vunpack.c.h.bf16 %v89
    %v245 = vunpack.c.l.bf16 %v90
    %v246 = vunpack.c.h.bf16 %v90
    %v247 = vunpack.c.l.bf16 %v91
    %v248 = vunpack.c.h.bf16 %v91
    %v249 = vunpack.c.l.bf16 %v92
    %v250 = vunpack.c.h.bf16 %v92
    %v251 = vunpack.c.l.bf16 %v93
    %v252 = vunpack.c.h.bf16 %v93
    %v253 = vunpack.c.l.bf16 %v94
    %v254 = vunpack.c.h.bf16 %v94
    %v255 = vunpack.c.l.bf16 %v95
    %v256 = vunpack.c.h.bf16 %v95
    %v257 = vunpack.c.l.bf16 %v96
    %v258 = vunpack.c.h.bf16 %v96
    %v259 = vunpack.c.l.bf16 %v97
    %v260 = vunpack.c.h.bf16 %v97
    %v261 = vunpack.c.l.bf16 %v98
    %v262 = vunpack.c.h.bf16 %v98
    %v263 = vunpack.c.l.bf16 %v99
    %v264 = vunpack.c.h.bf16 %v99
    %v265 = vunpack.c.l.bf16 %v100
    %v266 = vunpack.c.h.bf16 %v100
    %v267 = vunpack.c.l.bf16 %v101
    %v268 = vunpack.c.h.bf16 %v101
    %v269 = vunpack.c.l.bf16 %v102
    %v270 = vunpack.c.h.bf16 %v102
    %v271 = vunpack.c.l.bf16 %v103
    %v272 = vunpack.c.h.bf16 %v103
    %v273 = vunpack.c.l.bf16 %v104
    %v274 = vunpack.c.h.bf16 %v104
    %v275 = vunpack.c.l.bf16 %v105
    %v276 = vunpack.c.h.bf16 %v105
    %v277 = vunpack.c.l.bf16 %v106
    %v278 = vunpack.c.h.bf16 %v106
    %v279 = vunpack.c.l.bf16 %v107
    %v280 = vunpack.c.h.bf16 %v107
    %v281 = vunpack.c.l.bf16 %v108
    %v282 = vunpack.c.h.bf16 %v108
    %v283 = vunpack.c.l.bf16 %v109
    %v284 = vunpack.c.h.bf16 %v109
    %v285 = vunpack.c.l.bf16 %v110
    %v286 = vunpack.c.h.bf16 %v110
    %v287 = vunpack.c.l.bf16 %v111
    %v288 = vunpack.c.h.bf16 %v111
    %v289 = vunpack.c.l.bf16 %v112
    %v290 = vunpack.c.h.bf16 %v112
    %v291 = vunpack.c.l.bf16 %v113
    %v292 = vunpack.c.h.bf16 %v113
    %v293 = vunpack.c.l.bf16 %v114
    %v294 = vunpack.c.h.bf16 %v114
    %v295 = vunpack.c.l.bf16 %v115
    %v296 = vunpack.c.h.bf16 %v115
    %v297 = vunpack.c.l.bf16 %v116
    %v298 = vunpack.c.h.bf16 %v116
    %v299 = vunpack.c.l.bf16 %v117
    %v300 = vunpack.c.h.bf16 %v117
    %v301 = vunpack.c.l.bf16 %v118
    %v302 = vunpack.c.h.bf16 %v118
    %v303 = vunpack.c.l.bf16 %v119
    %v304 = vunpack.c.h.bf16 %v119
    %v305 = vunpack.c.l.bf16 %v120
    %v306 = vunpack.c.h.bf16 %v120
    %v307 = vunpack.c.l.bf16 %v121
    %v308 = vunpack.c.h.bf16 %v121
    %v309 = vunpack.c.l.bf16 %v122
    %v310 = vunpack.c.h.bf16 %v122
    %v311 = vunpack.c.l.bf16 %v123
    %v312 = vunpack.c.h.bf16 %v123
    %v313 = vunpack.c.l.bf16 %v124
    %v314 = vunpack.c.h.bf16 %v124
    %v315 = vunpack.c.l.bf16 %v125
    %v316 = vunpack.c.h.bf16 %v125
    %v317 = vunpack.c.l.bf16 %v126
    %v318 = vunpack.c.h.bf16 %v126
    %v319 = vunpack.c.l.bf16 %v127
    %v320 = vunpack.c.h.bf16 %v127
    %v321 = vunpack.c.l.bf16 %v128
    %v322 = vunpack.c.h.bf16 %v128
    %v323 = vunpack.c.l.bf16 %v129
    %v324 = vunpack.c.h.bf16 %v129
    %v325 = vunpack.c.l.bf16 %v130
    %v326 = vunpack.c.h.bf16 %v130
    %v327 = vunpack.c.l.bf16 %v131
    %v328 = vunpack.c.h.bf16 %v131
    %v329 = vunpack.c.l.bf16 %v132
    %v330 = vunpack.c.h.bf16 %v132
    %v331 = vunpack.c.l.bf16 %v133
    %v332 = vunpack.c.h.bf16 %v133
    %v333 = vunpack.c.l.bf16 %v134
    %v334 = vunpack.c.h.bf16 %v134
    %v335 = vunpack.c.l.bf16 %v135
    %v336 = vunpack.c.h.bf16 %v135
    %v337 = vunpack.c.l.bf16 %v136
    %v338 = vunpack.c.h.bf16 %v136
    %v339 = vunpack.c.l.bf16 %v137
    %v340 = vunpack.c.h.bf16 %v137
    %v341 = vunpack.c.l.bf16 %v138
    %v342 = vunpack.c.h.bf16 %v138
    %v343 = vunpack.c.l.bf16 %v139
    %v344 = vunpack.c.h.bf16 %v139
    %v345 = vunpack.c.l.bf16 %v140
    %v346 = vunpack.c.h.bf16 %v140
    %v347 = vunpack.c.l.bf16 %v141
    %v348 = vunpack.c.h.bf16 %v141
    %v349 = vunpack.c.l.bf16 %v142
    %v350 = vunpack.c.h.bf16 %v142
    %v351 = vunpack.c.l.bf16 %v143
    %v352 = vunpack.c.h.bf16 %v143
    %v353 = vunpack.c.l.bf16 %v144
    %v354 = vunpack.c.h.bf16 %v144
    %v355 = vunpack.c.l.bf16 %v145
    %v356 = vunpack.c.h.bf16 %v145
    %v357 = vunpack.c.l.bf16 %v146
    %v358 = vunpack.c.h.bf16 %v146
    %v359 = vunpack.c.l.bf16 %v147
    %v360 = vunpack.c.h.bf16 %v147
    %v361 = vunpack.c.l.bf16 %v148
    %v362 = vunpack.c.h.bf16 %v148
    %v363 = vunpack.c.l.bf16 %v149
    %v364 = vunpack.c.h.bf16 %v149
    %v365 = vunpack.c.l.bf16 %v150
    %v366 = vunpack.c.h.bf16 %v150
    %v367 = vunpack.c.l.bf16 %v151
    %v368 = vunpack.c.h.bf16 %v151
    %v369 = vunpack.c.l.bf16 %v152
    %v370 = vunpack.c.h.bf16 %v152
    %v371 = vunpack.c.l.bf16 %v153
    %v372 = vunpack.c.h.bf16 %v153
    %v373 = vunpack.c.l.bf16 %v154
    %v374 = vunpack.c.h.bf16 %v154
    %v375 = vunpack.c.l.bf16 %v155
    %v376 = vunpack.c.h.bf16 %v155
    %v377 = vunpack.c.l.bf16 %v156
    %v378 = vunpack.c.h.bf16 %v156
    %v379 = vunpack.c.l.bf16 %v157
    %v380 = vunpack.c.h.bf16 %v157
    %v381 = vunpack.c.l.bf16 %v158
    %v382 = vunpack.c.h.bf16 %v158
    %v383 = vunpack.c.l.bf16 %v159
    %v384 = vunpack.c.h.bf16 %v159
    %v385 = vunpack.c.l.bf16 %v160
    %v386 = vunpack.c.h.bf16 %v160
    %v387 = vunpack.c.l.bf16 %v161
    %v388 = vunpack.c.h.bf16 %v161
    %v389 = vunpack.c.l.bf16 %v162
    %v390 = vunpack.c.h.bf16 %v162
    %v391 = vunpack.c.l.bf16 %v163
    %v392 = vunpack.c.h.bf16 %v163
    %v393 = vunpack.c.l.bf16 %v164
    %v394 = vunpack.c.h.bf16 %v164
    %v395 = vunpack.c.l.bf16 %v165
    %v396 = vunpack.c.h.bf16 %v165
    %v397 = vunpack.c.l.bf16 %v166
    %v398 = vunpack.c.h.bf16 %v166
    %v399 = vunpack.c.l.bf16 %v167
    %v400 = vunpack.c.h.bf16 %v167
    %v401 = vunpack.c.l.bf16 %v168
    %v402 = vunpack.c.h.bf16 %v168
    %v403 = vunpack.c.l.bf16 %v169
    %v404 = vunpack.c.h.bf16 %v169
    %v405 = vunpack.c.l.bf16 %v170
    %v406 = vunpack.c.h.bf16 %v170
    %v407 = vunpack.c.l.bf16 %v171
    %v408 = vunpack.c.h.bf16 %v171
    %v409 = vunpack.c.l.bf16 %v172
    %v410 = vunpack.c.h.bf16 %v172
    %v411 = vunpack.c.l.bf16 %v173
    %v412 = vunpack.c.h.bf16 %v173
    %v413 = vunpack.c.l.bf16 %v174
    %v414 = vunpack.c.h.bf16 %v174
    %v415 = vunpack.c.l.bf16 %v175
    %v416 = vunpack.c.h.bf16 %v175
    %v417 = vunpack.c.l.bf16 %v176
    %v418 = vunpack.c.h.bf16 %v176
    %v419 = vunpack.c.l.bf16 %v177
    %v420 = vunpack.c.h.bf16 %v177
    %v421 = vunpack.c.l.bf16 %v178
    %v422 = vunpack.c.h.bf16 %v178
    %v423 = vunpack.c.l.bf16 %v179
    %v424 = vunpack.c.h.bf16 %v179
    %v425 = vunpack.c.l.bf16 %v180
    %v426 = vunpack.c.h.bf16 %v180
    %v427 = vunpack.c.l.bf16 %v181
    %v428 = vunpack.c.h.bf16 %v181
    %v429 = vunpack.c.l.bf16 %v182
    %v430 = vunpack.c.h.bf16 %v182
    %v431 = vunpack.c.l.bf16 %v183
    %v432 = vunpack.c.h.bf16 %v183
    %v433 = vunpack.c.l.bf16 %v184
    %v434 = vunpack.c.h.bf16 %v184
    %v435 = vunpack.c.l.bf16 %v185
    %v436 = vunpack.c.h.bf16 %v185
    %v437 = vunpack.c.l.bf16 %v186
    %v438 = vunpack.c.h.bf16 %v186
    %v439 = vunpack.c.l.bf16 %v187
    %v440 = vunpack.c.h.bf16 %v187
    %v441 = vunpack.c.l.bf16 %v188
    %v442 = vunpack.c.h.bf16 %v188
    %v443 = vunpack.c.l.bf16 %v189
    %v444 = vunpack.c.h.bf16 %v189
    %v445 = vunpack.c.l.bf16 %v190
    %v446 = vunpack.c.h.bf16 %v190
    %s447 = scalar_lea.vmem [#allocation5], 1024
    %v448 = vld [vmem:[%s447] sm:$0xff]
    %v449 = vld [vmem:[%s447 + $0x8] sm:$0xff]
    %v450 = vld [vmem:[%s447 + $0x10] sm:$0xff]
    %v451 = vld [vmem:[%s447 + $0x18] sm:$0xff]
    %v452 = vld [vmem:[%s447 + $0x20] sm:$0xff]
    %v453 = vld [vmem:[%s447 + $0x28] sm:$0xff]
    %v454 = vld [vmem:[%s447 + $0x30] sm:$0xff]
    %v455 = vld [vmem:[%s447 + $0x38] sm:$0xff]
    %v456 = vld [vmem:[%s447 + $0x40] sm:$0xff]
    %v457 = vld [vmem:[%s447 + $0x48] sm:$0xff]
    %v458 = vld [vmem:[%s447 + $0x50] sm:$0xff]
    %v459 = vld [vmem:[%s447 + $0x58] sm:$0xff]
    %v460 = vld [vmem:[%s447 + $0x60] sm:$0xff]
    %v461 = vld [vmem:[%s447 + $0x68] sm:$0xff]
    %v462 = vld [vmem:[%s447 + $0x70] sm:$0xff]
    %v463 = vld [vmem:[%s447 + $0x78] sm:$0xff]
    %v464 = vld [vmem:[%s447 + $0x80] sm:$0xff]
    %v465 = vld [vmem:[%s447 + $0x88] sm:$0xff]
    %v466 = vld [vmem:[%s447 + $0x90] sm:$0xff]
    %v467 = vld [vmem:[%s447 + $0x98] sm:$0xff]
    %v468 = vld [vmem:[%s447 + $0xa0] sm:$0xff]
    %v469 = vld [vmem:[%s447 + $0xa8] sm:$0xff]
    %v470 = vld [vmem:[%s447 + $0xb0] sm:$0xff]
    %v471 = vld [vmem:[%s447 + $0xb8] sm:$0xff]
    %v472 = vld [vmem:[%s447 + $0xc0] sm:$0xff]
    %v473 = vld [vmem:[%s447 + $0xc8] sm:$0xff]
    %v474 = vld [vmem:[%s447 + $0xd0] sm:$0xff]
    %v475 = vld [vmem:[%s447 + $0xd8] sm:$0xff]
    %v476 = vld [vmem:[%s447 + $0xe0] sm:$0xff]
    %v477 = vld [vmem:[%s447 + $0xe8] sm:$0xff]
    %v478 = vld [vmem:[%s447 + $0xf0] sm:$0xff]
    %v479 = vld [vmem:[%s447 + $0xf8] sm:$0xff]
    %v480 = vld [vmem:[%s447 + $0x100] sm:$0xff]
    %v481 = vld [vmem:[%s447 + $0x108] sm:$0xff]
    %v482 = vld [vmem:[%s447 + $0x110] sm:$0xff]
    %v483 = vld [vmem:[%s447 + $0x118] sm:$0xff]
    %v484 = vld [vmem:[%s447 + $0x120] sm:$0xff]
    %v485 = vld [vmem:[%s447 + $0x128] sm:$0xff]
    %v486 = vld [vmem:[%s447 + $0x130] sm:$0xff]
    %v487 = vld [vmem:[%s447 + $0x138] sm:$0xff]
    %v488 = vld [vmem:[%s447 + $0x140] sm:$0xff]
    %v489 = vld [vmem:[%s447 + $0x148] sm:$0xff]
    %v490 = vld [vmem:[%s447 + $0x150] sm:$0xff]
    %v491 = vld [vmem:[%s447 + $0x158] sm:$0xff]
    %v492 = vld [vmem:[%s447 + $0x160] sm:$0xff]
    %v493 = vld [vmem:[%s447 + $0x168] sm:$0xff]
    %v494 = vld [vmem:[%s447 + $0x170] sm:$0xff]
    %v495 = vld [vmem:[%s447 + $0x178] sm:$0xff]
    %v496 = vld [vmem:[%s447 + $0x180] sm:$0xff]
    %v497 = vld [vmem:[%s447 + $0x188] sm:$0xff]
    %v498 = vld [vmem:[%s447 + $0x190] sm:$0xff]
    %v499 = vld [vmem:[%s447 + $0x198] sm:$0xff]
    %v500 = vld [vmem:[%s447 + $0x1a0] sm:$0xff]
    %v501 = vld [vmem:[%s447 + $0x1a8] sm:$0xff]
    %v502 = vld [vmem:[%s447 + $0x1b0] sm:$0xff]
    %v503 = vld [vmem:[%s447 + $0x1b8] sm:$0xff]
    %v504 = vld [vmem:[%s447 + $0x1c0] sm:$0xff]
    %v505 = vld [vmem:[%s447 + $0x1c8] sm:$0xff]
    %v506 = vld [vmem:[%s447 + $0x1d0] sm:$0xff]
    %v507 = vld [vmem:[%s447 + $0x1d8] sm:$0xff]
    %v508 = vld [vmem:[%s447 + $0x1e0] sm:$0xff]
    %v509 = vld [vmem:[%s447 + $0x1e8] sm:$0xff]
    %v510 = vld [vmem:[%s447 + $0x1f0] sm:$0xff]
    %v511 = vld [vmem:[%s447 + $0x1f8] sm:$0xff]
    %v512 = vld [vmem:[%s447 + $0x200] sm:$0xff]
    %v513 = vld [vmem:[%s447 + $0x208] sm:$0xff]
    %v514 = vld [vmem:[%s447 + $0x210] sm:$0xff]
    %v515 = vld [vmem:[%s447 + $0x218] sm:$0xff]
    %v516 = vld [vmem:[%s447 + $0x220] sm:$0xff]
    %v517 = vld [vmem:[%s447 + $0x228] sm:$0xff]
    %v518 = vld [vmem:[%s447 + $0x230] sm:$0xff]
    %v519 = vld [vmem:[%s447 + $0x238] sm:$0xff]
    %v520 = vld [vmem:[%s447 + $0x240] sm:$0xff]
    %v521 = vld [vmem:[%s447 + $0x248] sm:$0xff]
    %v522 = vld [vmem:[%s447 + $0x250] sm:$0xff]
    %v523 = vld [vmem:[%s447 + $0x258] sm:$0xff]
    %v524 = vld [vmem:[%s447 + $0x260] sm:$0xff]
    %v525 = vld [vmem:[%s447 + $0x268] sm:$0xff]
    %v526 = vld [vmem:[%s447 + $0x270] sm:$0xff]
    %v527 = vld [vmem:[%s447 + $0x278] sm:$0xff]
    %v528 = vld [vmem:[%s447 + $0x280] sm:$0xff]
    %v529 = vld [vmem:[%s447 + $0x288] sm:$0xff]
    %v530 = vld [vmem:[%s447 + $0x290] sm:$0xff]
    %v531 = vld [vmem:[%s447 + $0x298] sm:$0xff]
    %v532 = vld [vmem:[%s447 + $0x2a0] sm:$0xff]
    %v533 = vld [vmem:[%s447 + $0x2a8] sm:$0xff]
    %v534 = vld [vmem:[%s447 + $0x2b0] sm:$0xff]
    %v535 = vld [vmem:[%s447 + $0x2b8] sm:$0xff]
    %v536 = vld [vmem:[%s447 + $0x2c0] sm:$0xff]
    %v537 = vld [vmem:[%s447 + $0x2c8] sm:$0xff]
    %v538 = vld [vmem:[%s447 + $0x2d0] sm:$0xff]
    %v539 = vld [vmem:[%s447 + $0x2d8] sm:$0xff]
    %v540 = vld [vmem:[%s447 + $0x2e0] sm:$0xff]
    %v541 = vld [vmem:[%s447 + $0x2e8] sm:$0xff]
    %v542 = vld [vmem:[%s447 + $0x2f0] sm:$0xff]
    %v543 = vld [vmem:[%s447 + $0x2f8] sm:$0xff]
    %v544 = vld [vmem:[%s447 + $0x300] sm:$0xff]
    %v545 = vld [vmem:[%s447 + $0x308] sm:$0xff]
    %v546 = vld [vmem:[%s447 + $0x310] sm:$0xff]
    %v547 = vld [vmem:[%s447 + $0x318] sm:$0xff]
    %v548 = vld [vmem:[%s447 + $0x320] sm:$0xff]
    %v549 = vld [vmem:[%s447 + $0x328] sm:$0xff]
    %v550 = vld [vmem:[%s447 + $0x330] sm:$0xff]
    %v551 = vld [vmem:[%s447 + $0x338] sm:$0xff]
    %v552 = vld [vmem:[%s447 + $0x340] sm:$0xff]
    %v553 = vld [vmem:[%s447 + $0x348] sm:$0xff]
    %v554 = vld [vmem:[%s447 + $0x350] sm:$0xff]
    %v555 = vld [vmem:[%s447 + $0x358] sm:$0xff]
    %v556 = vld [vmem:[%s447 + $0x360] sm:$0xff]
    %v557 = vld [vmem:[%s447 + $0x368] sm:$0xff]
    %v558 = vld [vmem:[%s447 + $0x370] sm:$0xff]
    %v559 = vld [vmem:[%s447 + $0x378] sm:$0xff]
    %v560 = vld [vmem:[%s447 + $0x380] sm:$0xff]
    %v561 = vld [vmem:[%s447 + $0x388] sm:$0xff]
    %v562 = vld [vmem:[%s447 + $0x390] sm:$0xff]
    %v563 = vld [vmem:[%s447 + $0x398] sm:$0xff]
    %v564 = vld [vmem:[%s447 + $0x3a0] sm:$0xff]
    %v565 = vld [vmem:[%s447 + $0x3a8] sm:$0xff]
    %v566 = vld [vmem:[%s447 + $0x3b0] sm:$0xff]
    %v567 = vld [vmem:[%s447 + $0x3b8] sm:$0xff]
    %v568 = vld [vmem:[%s447 + $0x3c0] sm:$0xff]
    %v569 = vld [vmem:[%s447 + $0x3c8] sm:$0xff]
    %v570 = vld [vmem:[%s447 + $0x3d0] sm:$0xff]
    %v571 = vld [vmem:[%s447 + $0x3d8] sm:$0xff]
    %v572 = vld [vmem:[%s447 + $0x3e0] sm:$0xff]
    %v573 = vld [vmem:[%s447 + $0x3e8] sm:$0xff]
    %v574 = vld [vmem:[%s447 + $0x3f0] sm:$0xff]
    %v575 = vld [vmem:[%s447 + $0x3f8] sm:$0xff]
    %v576 = vunpack.c.l.bf16 %v448
    %v577 = vunpack.c.h.bf16 %v448
    %v578 = vunpack.c.l.bf16 %v449
    %v579 = vunpack.c.h.bf16 %v449
    %v580 = vunpack.c.l.bf16 %v450
    %v581 = vunpack.c.h.bf16 %v450
    %v582 = vunpack.c.l.bf16 %v451
    %v583 = vunpack.c.h.bf16 %v451
    %v584 = vunpack.c.l.bf16 %v452
    %v585 = vunpack.c.h.bf16 %v452
    %v586 = vunpack.c.l.bf16 %v453
    %v587 = vunpack.c.h.bf16 %v453
    %v588 = vunpack.c.l.bf16 %v454
    %v589 = vunpack.c.h.bf16 %v454
    %v590 = vunpack.c.l.bf16 %v455
    %v591 = vunpack.c.h.bf16 %v455
    %v592 = vunpack.c.l.bf16 %v456
    %v593 = vunpack.c.h.bf16 %v456
    %v594 = vunpack.c.l.bf16 %v457
    %v595 = vunpack.c.h.bf16 %v457
    %v596 = vunpack.c.l.bf16 %v458
    %v597 = vunpack.c.h.bf16 %v458
    %v598 = vunpack.c.l.bf16 %v459
    %v599 = vunpack.c.h.bf16 %v459
    %v600 = vunpack.c.l.bf16 %v460
    %v601 = vunpack.c.h.bf16 %v460
    %v602 = vunpack.c.l.bf16 %v461
    %v603 = vunpack.c.h.bf16 %v461
    %v604 = vunpack.c.l.bf16 %v462
    %v605 = vunpack.c.h.bf16 %v462
    %v606 = vunpack.c.l.bf16 %v463
    %v607 = vunpack.c.h.bf16 %v463
    %v608 = vunpack.c.l.bf16 %v464
    %v609 = vunpack.c.h.bf16 %v464
    %v610 = vunpack.c.l.bf16 %v465
    %v611 = vunpack.c.h.bf16 %v465
    %v612 = vunpack.c.l.bf16 %v466
    %v613 = vunpack.c.h.bf16 %v466
    %v614 = vunpack.c.l.bf16 %v467
    %v615 = vunpack.c.h.bf16 %v467
    %v616 = vunpack.c.l.bf16 %v468
    %v617 = vunpack.c.h.bf16 %v468
    %v618 = vunpack.c.l.bf16 %v469
    %v619 = vunpack.c.h.bf16 %v469
    %v620 = vunpack.c.l.bf16 %v470
    %v621 = vunpack.c.h.bf16 %v470
    %v622 = vunpack.c.l.bf16 %v471
    %v623 = vunpack.c.h.bf16 %v471
    %v624 = vunpack.c.l.bf16 %v472
    %v625 = vunpack.c.h.bf16 %v472
    %v626 = vunpack.c.l.bf16 %v473
    %v627 = vunpack.c.h.bf16 %v473
    %v628 = vunpack.c.l.bf16 %v474
    %v629 = vunpack.c.h.bf16 %v474
    %v630 = vunpack.c.l.bf16 %v475
    %v631 = vunpack.c.h.bf16 %v475
    %v632 = vunpack.c.l.bf16 %v476
    %v633 = vunpack.c.h.bf16 %v476
    %v634 = vunpack.c.l.bf16 %v477
    %v635 = vunpack.c.h.bf16 %v477
    %v636 = vunpack.c.l.bf16 %v478
    %v637 = vunpack.c.h.bf16 %v478
    %v638 = vunpack.c.l.bf16 %v479
    %v639 = vunpack.c.h.bf16 %v479
    %v640 = vunpack.c.l.bf16 %v480
    %v641 = vunpack.c.h.bf16 %v480
    %v642 = vunpack.c.l.bf16 %v481
    %v643 = vunpack.c.h.bf16 %v481
    %v644 = vunpack.c.l.bf16 %v482
    %v645 = vunpack.c.h.bf16 %v482
    %v646 = vunpack.c.l.bf16 %v483
    %v647 = vunpack.c.h.bf16 %v483
    %v648 = vunpack.c.l.bf16 %v484
    %v649 = vunpack.c.h.bf16 %v484
    %v650 = vunpack.c.l.bf16 %v485
    %v651 = vunpack.c.h.bf16 %v485
    %v652 = vunpack.c.l.bf16 %v486
    %v653 = vunpack.c.h.bf16 %v486
    %v654 = vunpack.c.l.bf16 %v487
    %v655 = vunpack.c.h.bf16 %v487
    %v656 = vunpack.c.l.bf16 %v488
    %v657 = vunpack.c.h.bf16 %v488
    %v658 = vunpack.c.l.bf16 %v489
    %v659 = vunpack.c.h.bf16 %v489
    %v660 = vunpack.c.l.bf16 %v490
    %v661 = vunpack.c.h.bf16 %v490
    %v662 = vunpack.c.l.bf16 %v491
    %v663 = vunpack.c.h.bf16 %v491
    %v664 = vunpack.c.l.bf16 %v492
    %v665 = vunpack.c.h.bf16 %v492
    %v666 = vunpack.c.l.bf16 %v493
    %v667 = vunpack.c.h.bf16 %v493
    %v668 = vunpack.c.l.bf16 %v494
    %v669 = vunpack.c.h.bf16 %v494
    %v670 = vunpack.c.l.bf16 %v495
    %v671 = vunpack.c.h.bf16 %v495
    %v672 = vunpack.c.l.bf16 %v496
    %v673 = vunpack.c.h.bf16 %v496
    %v674 = vunpack.c.l.bf16 %v497
    %v675 = vunpack.c.h.bf16 %v497
    %v676 = vunpack.c.l.bf16 %v498
    %v677 = vunpack.c.h.bf16 %v498
    %v678 = vunpack.c.l.bf16 %v499
    %v679 = vunpack.c.h.bf16 %v499
    %v680 = vunpack.c.l.bf16 %v500
    %v681 = vunpack.c.h.bf16 %v500
    %v682 = vunpack.c.l.bf16 %v501
    %v683 = vunpack.c.h.bf16 %v501
    %v684 = vunpack.c.l.bf16 %v502
    %v685 = vunpack.c.h.bf16 %v502
    %v686 = vunpack.c.l.bf16 %v503
    %v687 = vunpack.c.h.bf16 %v503
    %v688 = vunpack.c.l.bf16 %v504
    %v689 = vunpack.c.h.bf16 %v504
    %v690 = vunpack.c.l.bf16 %v505
    %v691 = vunpack.c.h.bf16 %v505
    %v692 = vunpack.c.l.bf16 %v506
    %v693 = vunpack.c.h.bf16 %v506
    %v694 = vunpack.c.l.bf16 %v507
    %v695 = vunpack.c.h.bf16 %v507
    %v696 = vunpack.c.l.bf16 %v508
    %v697 = vunpack.c.h.bf16 %v508
    %v698 = vunpack.c.l.bf16 %v509
    %v699 = vunpack.c.h.bf16 %v509
    %v700 = vunpack.c.l.bf16 %v510
    %v701 = vunpack.c.h.bf16 %v510
    %v702 = vunpack.c.l.bf16 %v511
    %v703 = vunpack.c.h.bf16 %v511
    %v704 = vunpack.c.l.bf16 %v512
    %v705 = vunpack.c.h.bf16 %v512
    %v706 = vunpack.c.l.bf16 %v513
    %v707 = vunpack.c.h.bf16 %v513
    %v708 = vunpack.c.l.bf16 %v514
    %v709 = vunpack.c.h.bf16 %v514
    %v710 = vunpack.c.l.bf16 %v515
    %v711 = vunpack.c.h.bf16 %v515
    %v712 = vunpack.c.l.bf16 %v516
    %v713 = vunpack.c.h.bf16 %v516
    %v714 = vunpack.c.l.bf16 %v517
    %v715 = vunpack.c.h.bf16 %v517
    %v716 = vunpack.c.l.bf16 %v518
    %v717 = vunpack.c.h.bf16 %v518
    %v718 = vunpack.c.l.bf16 %v519
    %v719 = vunpack.c.h.bf16 %v519
    %v720 = vunpack.c.l.bf16 %v520
    %v721 = vunpack.c.h.bf16 %v520
    %v722 = vunpack.c.l.bf16 %v521
    %v723 = vunpack.c.h.bf16 %v521
    %v724 = vunpack.c.l.bf16 %v522
    %v725 = vunpack.c.h.bf16 %v522
    %v726 = vunpack.c.l.bf16 %v523
    %v727 = vunpack.c.h.bf16 %v523
    %v728 = vunpack.c.l.bf16 %v524
    %v729 = vunpack.c.h.bf16 %v524
    %v730 = vunpack.c.l.bf16 %v525
    %v731 = vunpack.c.h.bf16 %v525
    %v732 = vunpack.c.l.bf16 %v526
    %v733 = vunpack.c.h.bf16 %v526
    %v734 = vunpack.c.l.bf16 %v527
    %v735 = vunpack.c.h.bf16 %v527
    %v736 = vunpack.c.l.bf16 %v528
    %v737 = vunpack.c.h.bf16 %v528
    %v738 = vunpack.c.l.bf16 %v529
    %v739 = vunpack.c.h.bf16 %v529
    %v740 = vunpack.c.l.bf16 %v530
    %v741 = vunpack.c.h.bf16 %v530
    %v742 = vunpack.c.l.bf16 %v531
    %v743 = vunpack.c.h.bf16 %v531
    %v744 = vunpack.c.l.bf16 %v532
    %v745 = vunpack.c.h.bf16 %v532
    %v746 = vunpack.c.l.bf16 %v533
    %v747 = vunpack.c.h.bf16 %v533
    %v748 = vunpack.c.l.bf16 %v534
    %v749 = vunpack.c.h.bf16 %v534
    %v750 = vunpack.c.l.bf16 %v535
    %v751 = vunpack.c.h.bf16 %v535
    %v752 = vunpack.c.l.bf16 %v536
    %v753 = vunpack.c.h.bf16 %v536
    %v754 = vunpack.c.l.bf16 %v537
    %v755 = vunpack.c.h.bf16 %v537
    %v756 = vunpack.c.l.bf16 %v538
    %v757 = vunpack.c.h.bf16 %v538
    %v758 = vunpack.c.l.bf16 %v539
    %v759 = vunpack.c.h.bf16 %v539
    %v760 = vunpack.c.l.bf16 %v540
    %v761 = vunpack.c.h.bf16 %v540
    %v762 = vunpack.c.l.bf16 %v541
    %v763 = vunpack.c.h.bf16 %v541
    %v764 = vunpack.c.l.bf16 %v542
    %v765 = vunpack.c.h.bf16 %v542
    %v766 = vunpack.c.l.bf16 %v543
    %v767 = vunpack.c.h.bf16 %v543
    %v768 = vunpack.c.l.bf16 %v544
    %v769 = vunpack.c.h.bf16 %v544
    %v770 = vunpack.c.l.bf16 %v545
    %v771 = vunpack.c.h.bf16 %v545
    %v772 = vunpack.c.l.bf16 %v546
    %v773 = vunpack.c.h.bf16 %v546
    %v774 = vunpack.c.l.bf16 %v547
    %v775 = vunpack.c.h.bf16 %v547
    %v776 = vunpack.c.l.bf16 %v548
    %v777 = vunpack.c.h.bf16 %v548
    %v778 = vunpack.c.l.bf16 %v549
    %v779 = vunpack.c.h.bf16 %v549
    %v780 = vunpack.c.l.bf16 %v550
    %v781 = vunpack.c.h.bf16 %v550
    %v782 = vunpack.c.l.bf16 %v551
    %v783 = vunpack.c.h.bf16 %v551
    %v784 = vunpack.c.l.bf16 %v552
    %v785 = vunpack.c.h.bf16 %v552
    %v786 = vunpack.c.l.bf16 %v553
    %v787 = vunpack.c.h.bf16 %v553
    %v788 = vunpack.c.l.bf16 %v554
    %v789 = vunpack.c.h.bf16 %v554
    %v790 = vunpack.c.l.bf16 %v555
    %v791 = vunpack.c.h.bf16 %v555
    %v792 = vunpack.c.l.bf16 %v556
    %v793 = vunpack.c.h.bf16 %v556
    %v794 = vunpack.c.l.bf16 %v557
    %v795 = vunpack.c.h.bf16 %v557
    %v796 = vunpack.c.l.bf16 %v558
    %v797 = vunpack.c.h.bf16 %v558
    %v798 = vunpack.c.l.bf16 %v559
    %v799 = vunpack.c.h.bf16 %v559
    %v800 = vunpack.c.l.bf16 %v560
    %v801 = vunpack.c.h.bf16 %v560
    %v802 = vunpack.c.l.bf16 %v561
    %v803 = vunpack.c.h.bf16 %v561
    %v804 = vunpack.c.l.bf16 %v562
    %v805 = vunpack.c.h.bf16 %v562
    %v806 = vunpack.c.l.bf16 %v563
    %v807 = vunpack.c.h.bf16 %v563
    %v808 = vunpack.c.l.bf16 %v564
    %v809 = vunpack.c.h.bf16 %v564
    %v810 = vunpack.c.l.bf16 %v565
    %v811 = vunpack.c.h.bf16 %v565
    %v812 = vunpack.c.l.bf16 %v566
    %v813 = vunpack.c.h.bf16 %v566
    %v814 = vunpack.c.l.bf16 %v567
    %v815 = vunpack.c.h.bf16 %v567
    %v816 = vunpack.c.l.bf16 %v568
    %v817 = vunpack.c.h.bf16 %v568
    %v818 = vunpack.c.l.bf16 %v569
    %v819 = vunpack.c.h.bf16 %v569
    %v820 = vunpack.c.l.bf16 %v570
    %v821 = vunpack.c.h.bf16 %v570
    %v822 = vunpack.c.l.bf16 %v571
    %v823 = vunpack.c.h.bf16 %v571
    %v824 = vunpack.c.l.bf16 %v572
    %v825 = vunpack.c.h.bf16 %v572
    %v826 = vunpack.c.l.bf16 %v573
    %v827 = vunpack.c.h.bf16 %v573
    %v828 = vunpack.c.l.bf16 %v574
    %v829 = vunpack.c.h.bf16 %v574
    %v830 = vunpack.c.l.bf16 %v575
    %v831 = vunpack.c.h.bf16 %v575
    %v832 = vld [vmem:[%s2] sm:$0xf]
    %v834 = vlaneseq
    %v835 = vshrl.u32 %v834, 7
    %v836 = vsub.s32 0, %v835
    %v837 = vrot.slane %v832, %v836
    %v838 = vlaneseq
    %v839 = vshrl.u32 %v838, 7
    %v840 = vsub.s32 1, %v839
    %v841 = vrot.slane %v832, %v840
    %v842 = vlaneseq
    %v843 = vshrl.u32 %v842, 7
    %v844 = vsub.s32 2, %v843
    %v845 = vrot.slane %v832, %v844
    %v846 = vlaneseq
    %v847 = vshrl.u32 %v846, 7
    %v848 = vsub.s32 3, %v847
    %v849 = vrot.slane %v832, %v848
    %854 = vmatprep.subr.mxu0 %v192
    %855 = vmatpush1.xpose.msra.mxu0 %v191
    %856 = vmatprep.subr.mxu0 %v196
    %857 = vmatpush1.xpose.msra.mxu0 %v195
    %858 = vmatprep.subr.mxu0 %v200
    %859 = vmatpush1.xpose.msra.mxu0 %v199
    %860 = vmatprep.subr.mxu0 %v204
    %861 = vmatpush1.xpose.msra.mxu0 %v203
    %862 = vmatprep.subr.mxu0 %v208
    %863 = vmatpush1.xpose.msra.mxu0 %v207
    %864 = vmatprep.subr.mxu0 %v212
    %865 = vmatpush1.xpose.msra.mxu0 %v211
    %866 = vmatprep.subr.mxu0 %v216
    %867 = vmatpush1.xpose.msra.mxu0 %v215
    %868 = vmatprep.subr.mxu0 %v220
    %869 = vmatpush1.xpose.msra.mxu0 %v219
    %870 = vmatprep.subr.mxu0 %v224
    %871 = vmatpush1.xpose.msra.mxu0 %v223
    %872 = vmatprep.subr.mxu0 %v228
    %873 = vmatpush1.xpose.msra.mxu0 %v227
    %874 = vmatprep.subr.mxu0 %v232
    %875 = vmatpush1.xpose.msra.mxu0 %v231
    %876 = vmatprep.subr.mxu0 %v236
    %877 = vmatpush1.xpose.msra.mxu0 %v235
    %878 = vmatprep.subr.mxu0 %v240
    %879 = vmatpush1.xpose.msra.mxu0 %v239
    %880 = vmatprep.subr.mxu0 %v244
    %881 = vmatpush1.xpose.msra.mxu0 %v243
    %882 = vmatprep.subr.mxu0 %v248
    %883 = vmatpush1.xpose.msra.mxu0 %v247
    %884 = vmatprep.subr.mxu0 %v252
    %885 = vmatpush1.xpose.msra.mxu0 %v251
    %886 = vmatprep.subr.mxu0 %v256
    %887 = vmatpush1.xpose.msra.mxu0 %v255
    %888 = vmatprep.subr.mxu0 %v260
    %889 = vmatpush1.xpose.msra.mxu0 %v259
    %890 = vmatprep.subr.mxu0 %v264
    %891 = vmatpush1.xpose.msra.mxu0 %v263
    %892 = vmatprep.subr.mxu0 %v268
    %893 = vmatpush1.xpose.msra.mxu0 %v267
    %894 = vmatprep.subr.mxu0 %v272
    %895 = vmatpush1.xpose.msra.mxu0 %v271
    %896 = vmatprep.subr.mxu0 %v276
    %897 = vmatpush1.xpose.msra.mxu0 %v275
    %898 = vmatprep.subr.mxu0 %v280
    %899 = vmatpush1.xpose.msra.mxu0 %v279
    %900 = vmatprep.subr.mxu0 %v284
    %901 = vmatpush1.xpose.msra.mxu0 %v283
    %902 = vmatprep.subr.mxu0 %v288
    %903 = vmatpush1.xpose.msra.mxu0 %v287
    %904 = vmatprep.subr.mxu0 %v292
    %905 = vmatpush1.xpose.msra.mxu0 %v291
    %906 = vmatprep.subr.mxu0 %v296
    %907 = vmatpush1.xpose.msra.mxu0 %v295
    %908 = vmatprep.subr.mxu0 %v300
    %909 = vmatpush1.xpose.msra.mxu0 %v299
    %910 = vmatprep.subr.mxu0 %v304
    %911 = vmatpush1.xpose.msra.mxu0 %v303
    %912 = vmatprep.subr.mxu0 %v308
    %913 = vmatpush1.xpose.msra.mxu0 %v307
    %914 = vmatprep.subr.mxu0 %v312
    %915 = vmatpush1.xpose.msra.mxu0 %v311
    %916 = vmatprep.subr.mxu0 %v316
    %917 = vmatpush1.xpose.msra.mxu0 %v315
    %918 = vmatprep.mubr.f32.mxu0 %v60
    %919 = vmatmul.mubr.f32.gmra.mrb[0].mxu0 %v59
    %v920 = vpop.f32.mrb[0].mxu0
    %v921 = vadd.f32 %v837, %v920
    %v922 = vpop.f32.mrb[0].mxu0
    %v923 = vadd.f32 %v841, %v922
    %924 = vdwg.mxu0
    %925 = vmatprep.subr.mxu0 %v194
    %926 = vmatpush1.xpose.msra.mxu0 %v193
    %927 = vmatprep.subr.mxu0 %v198
    %928 = vmatpush1.xpose.msra.mxu0 %v197
    %929 = vmatprep.subr.mxu0 %v202
    %930 = vmatpush1.xpose.msra.mxu0 %v201
    %931 = vmatprep.subr.mxu0 %v206
    %932 = vmatpush1.xpose.msra.mxu0 %v205
    %933 = vmatprep.subr.mxu0 %v210
    %934 = vmatpush1.xpose.msra.mxu0 %v209
    %935 = vmatprep.subr.mxu0 %v214
    %936 = vmatpush1.xpose.msra.mxu0 %v213
    %937 = vmatprep.subr.mxu0 %v218
    %938 = vmatpush1.xpose.msra.mxu0 %v217
    %939 = vmatprep.subr.mxu0 %v222
    %940 = vmatpush1.xpose.msra.mxu0 %v221
    %941 = vmatprep.subr.mxu0 %v226
    %942 = vmatpush1.xpose.msra.mxu0 %v225
    %943 = vmatprep.subr.mxu0 %v230
    %944 = vmatpush1.xpose.msra.mxu0 %v229
    %945 = vmatprep.subr.mxu0 %v234
    %946 = vmatpush1.xpose.msra.mxu0 %v233
    %947 = vmatprep.subr.mxu0 %v238
    %948 = vmatpush1.xpose.msra.mxu0 %v237
    %949 = vmatprep.subr.mxu0 %v242
    %950 = vmatpush1.xpose.msra.mxu0 %v241
    %951 = vmatprep.subr.mxu0 %v246
    %952 = vmatpush1.xpose.msra.mxu0 %v245
    %953 = vmatprep.subr.mxu0 %v250
    %954 = vmatpush1.xpose.msra.mxu0 %v249
    %955 = vmatprep.subr.mxu0 %v254
    %956 = vmatpush1.xpose.msra.mxu0 %v253
    %957 = vmatprep.subr.mxu0 %v258
    %958 = vmatpush1.xpose.msra.mxu0 %v257
    %959 = vmatprep.subr.mxu0 %v262
    %960 = vmatpush1.xpose.msra.mxu0 %v261
    %961 = vmatprep.subr.mxu0 %v266
    %962 = vmatpush1.xpose.msra.mxu0 %v265
    %963 = vmatprep.subr.mxu0 %v270
    %964 = vmatpush1.xpose.msra.mxu0 %v269
    %965 = vmatprep.subr.mxu0 %v274
    %966 = vmatpush1.xpose.msra.mxu0 %v273
    %967 = vmatprep.subr.mxu0 %v278
    %968 = vmatpush1.xpose.msra.mxu0 %v277
    %969 = vmatprep.subr.mxu0 %v282
    %970 = vmatpush1.xpose.msra.mxu0 %v281
    %971 = vmatprep.subr.mxu0 %v286
    %972 = vmatpush1.xpose.msra.mxu0 %v285
    %973 = vmatprep.subr.mxu0 %v290
    %974 = vmatpush1.xpose.msra.mxu0 %v289
    %975 = vmatprep.subr.mxu0 %v294
    %976 = vmatpush1.xpose.msra.mxu0 %v293
    %977 = vmatprep.subr.mxu0 %v298
    %978 = vmatpush1.xpose.msra.mxu0 %v297
    %979 = vmatprep.subr.mxu0 %v302
    %980 = vmatpush1.xpose.msra.mxu0 %v301
    %981 = vmatprep.subr.mxu0 %v306
    %982 = vmatpush1.xpose.msra.mxu0 %v305
    %983 = vmatprep.subr.mxu0 %v310
    %984 = vmatpush1.xpose.msra.mxu0 %v309
    %985 = vmatprep.subr.mxu0 %v314
    %986 = vmatpush1.xpose.msra.mxu0 %v313
    %987 = vmatprep.subr.mxu0 %v318
    %988 = vmatpush1.xpose.msra.mxu0 %v317
    %989 = vmatprep.mubr.f32.mxu0 %v62
    %990 = vmatmul.mubr.f32.gmra.mrb[0].mxu0 %v61
    %v991 = vpop.f32.mrb[0].mxu0
    %v992 = vadd.f32 %v921, %v991
    %v993 = vpop.f32.mrb[0].mxu0
    %v994 = vadd.f32 %v923, %v993
    %995 = vdwg.mxu0
    %996 = vmatprep.subr.mxu0 %v320
    %997 = vmatpush1.xpose.msra.mxu0 %v319
    %998 = vmatprep.subr.mxu0 %v324
    %999 = vmatpush1.xpose.msra.mxu0 %v323
    %1000 = vmatprep.subr.mxu0 %v328
    %1001 = vmatpush1.xpose.msra.mxu0 %v327
    %1002 = vmatprep.subr.mxu0 %v332
    %1003 = vmatpush1.xpose.msra.mxu0 %v331
    %1004 = vmatprep.subr.mxu0 %v336
    %1005 = vmatpush1.xpose.msra.mxu0 %v335
    %1006 = vmatprep.subr.mxu0 %v340
    %1007 = vmatpush1.xpose.msra.mxu0 %v339
    %1008 = vmatprep.subr.mxu0 %v344
    %1009 = vmatpush1.xpose.msra.mxu0 %v343
    %1010 = vmatprep.subr.mxu0 %v348
    %1011 = vmatpush1.xpose.msra.mxu0 %v347
    %1012 = vmatprep.subr.mxu0 %v352
    %1013 = vmatpush1.xpose.msra.mxu0 %v351
    %1014 = vmatprep.subr.mxu0 %v356
    %1015 = vmatpush1.xpose.msra.mxu0 %v355
    %1016 = vmatprep.subr.mxu0 %v360
    %1017 = vmatpush1.xpose.msra.mxu0 %v359
    %1018 = vmatprep.subr.mxu0 %v364
    %1019 = vmatpush1.xpose.msra.mxu0 %v363
    %1020 = vmatprep.subr.mxu0 %v368
    %1021 = vmatpush1.xpose.msra.mxu0 %v367
    %1022 = vmatprep.subr.mxu0 %v372
    %1023 = vmatpush1.xpose.msra.mxu0 %v371
    %1024 = vmatprep.subr.mxu0 %v376
    %1025 = vmatpush1.xpose.msra.mxu0 %v375
    %1026 = vmatprep.subr.mxu0 %v380
    %1027 = vmatpush1.xpose.msra.mxu0 %v379
    %1028 = vmatprep.subr.mxu0 %v384
    %1029 = vmatpush1.xpose.msra.mxu0 %v383
    %1030 = vmatprep.subr.mxu0 %v388
    %1031 = vmatpush1.xpose.msra.mxu0 %v387
    %1032 = vmatprep.subr.mxu0 %v392
    %1033 = vmatpush1.xpose.msra.mxu0 %v391
    %1034 = vmatprep.subr.mxu0 %v396
    %1035 = vmatpush1.xpose.msra.mxu0 %v395
    %1036 = vmatprep.subr.mxu0 %v400
    %1037 = vmatpush1.xpose.msra.mxu0 %v399
    %1038 = vmatprep.subr.mxu0 %v404
    %1039 = vmatpush1.xpose.msra.mxu0 %v403
    %1040 = vmatprep.subr.mxu0 %v408
    %1041 = vmatpush1.xpose.msra.mxu0 %v407
    %1042 = vmatprep.subr.mxu0 %v412
    %1043 = vmatpush1.xpose.msra.mxu0 %v411
    %1044 = vmatprep.subr.mxu0 %v416
    %1045 = vmatpush1.xpose.msra.mxu0 %v415
    %1046 = vmatprep.subr.mxu0 %v420
    %1047 = vmatpush1.xpose.msra.mxu0 %v419
    %1048 = vmatprep.subr.mxu0 %v424
    %1049 = vmatpush1.xpose.msra.mxu0 %v423
    %1050 = vmatprep.subr.mxu0 %v428
    %1051 = vmatpush1.xpose.msra.mxu0 %v427
    %1052 = vmatprep.subr.mxu0 %v432
    %1053 = vmatpush1.xpose.msra.mxu0 %v431
    %1054 = vmatprep.subr.mxu0 %v436
    %1055 = vmatpush1.xpose.msra.mxu0 %v435
    %1056 = vmatprep.subr.mxu0 %v440
    %1057 = vmatpush1.xpose.msra.mxu0 %v439
    %1058 = vmatprep.subr.mxu0 %v444
    %1059 = vmatpush1.xpose.msra.mxu0 %v443
    %1060 = vmatprep.mubr.f32.mxu0 %v60
    %1061 = vmatmul.mubr.f32.gmra.mrb[0].mxu0 %v59
    %v1062 = vpop.f32.mrb[0].mxu0
    %v1063 = vadd.f32 %v845, %v1062
    %v1064 = vpop.f32.mrb[0].mxu0
    %v1065 = vadd.f32 %v849, %v1064
    %1066 = vdwg.mxu0
    %1067 = vmatprep.subr.mxu0 %v322
    %1068 = vmatpush1.xpose.msra.mxu0 %v321
    %1069 = vmatprep.subr.mxu0 %v326
    %1070 = vmatpush1.xpose.msra.mxu0 %v325
    %1071 = vmatprep.subr.mxu0 %v330
    %1072 = vmatpush1.xpose.msra.mxu0 %v329
    %1073 = vmatprep.subr.mxu0 %v334
    %1074 = vmatpush1.xpose.msra.mxu0 %v333
    %1075 = vmatprep.subr.mxu0 %v338
    %1076 = vmatpush1.xpose.msra.mxu0 %v337
    %1077 = vmatprep.subr.mxu0 %v342
    %1078 = vmatpush1.xpose.msra.mxu0 %v341
    %1079 = vmatprep.subr.mxu0 %v346
    %1080 = vmatpush1.xpose.msra.mxu0 %v345
    %1081 = vmatprep.subr.mxu0 %v350
    %1082 = vmatpush1.xpose.msra.mxu0 %v349
    %1083 = vmatprep.subr.mxu0 %v354
    %1084 = vmatpush1.xpose.msra.mxu0 %v353
    %1085 = vmatprep.subr.mxu0 %v358
    %1086 = vmatpush1.xpose.msra.mxu0 %v357
    %1087 = vmatprep.subr.mxu0 %v362
    %1088 = vmatpush1.xpose.msra.mxu0 %v361
    %1089 = vmatprep.subr.mxu0 %v366
    %1090 = vmatpush1.xpose.msra.mxu0 %v365
    %1091 = vmatprep.subr.mxu0 %v370
    %1092 = vmatpush1.xpose.msra.mxu0 %v369
    %1093 = vmatprep.subr.mxu0 %v374
    %1094 = vmatpush1.xpose.msra.mxu0 %v373
    %1095 = vmatprep.subr.mxu0 %v378
    %1096 = vmatpush1.xpose.msra.mxu0 %v377
    %1097 = vmatprep.subr.mxu0 %v382
    %1098 = vmatpush1.xpose.msra.mxu0 %v381
    %1099 = vmatprep.subr.mxu0 %v386
    %1100 = vmatpush1.xpose.msra.mxu0 %v385
    %1101 = vmatprep.subr.mxu0 %v390
    %1102 = vmatpush1.xpose.msra.mxu0 %v389
    %1103 = vmatprep.subr.mxu0 %v394
    %1104 = vmatpush1.xpose.msra.mxu0 %v393
    %1105 = vmatprep.subr.mxu0 %v398
    %1106 = vmatpush1.xpose.msra.mxu0 %v397
    %1107 = vmatprep.subr.mxu0 %v402
    %1108 = vmatpush1.xpose.msra.mxu0 %v401
    %1109 = vmatprep.subr.mxu0 %v406
    %1110 = vmatpush1.xpose.msra.mxu0 %v405
    %1111 = vmatprep.subr.mxu0 %v410
    %1112 = vmatpush1.xpose.msra.mxu0 %v409
    %1113 = vmatprep.subr.mxu0 %v414
    %1114 = vmatpush1.xpose.msra.mxu0 %v413
    %1115 = vmatprep.subr.mxu0 %v418
    %1116 = vmatpush1.xpose.msra.mxu0 %v417
    %1117 = vmatprep.subr.mxu0 %v422
    %1118 = vmatpush1.xpose.msra.mxu0 %v421
    %1119 = vmatprep.subr.mxu0 %v426
    %1120 = vmatpush1.xpose.msra.mxu0 %v425
    %1121 = vmatprep.subr.mxu0 %v430
    %1122 = vmatpush1.xpose.msra.mxu0 %v429
    %1123 = vmatprep.subr.mxu0 %v434
    %1124 = vmatpush1.xpose.msra.mxu0 %v433
    %1125 = vmatprep.subr.mxu0 %v438
    %1126 = vmatpush1.xpose.msra.mxu0 %v437
    %1127 = vmatprep.subr.mxu0 %v442
    %1128 = vmatpush1.xpose.msra.mxu0 %v441
    %1129 = vmatprep.subr.mxu0 %v446
    %1130 = vmatpush1.xpose.msra.mxu0 %v445
    %1131 = vmatprep.mubr.f32.mxu0 %v62
    %1132 = vmatmul.mubr.f32.gmra.mrb[0].mxu0 %v61
    %v1133 = vpop.f32.mrb[0].mxu0
    %v1134 = vadd.f32 %v1063, %v1133
    %v1135 = vpop.f32.mrb[0].mxu0
    %v1136 = vadd.f32 %v1065, %v1135
    %1137 = vdwg.mxu0
    %v1138 = vmax.f32 %v992, 0.0
    %v1139 = vmax.f32 %v994, 0.0
    %v1140 = vmax.f32 %v1134, 0.0
    %v1141 = vmax.f32 %v1136, 0.0
    %s1142 = scalar_lea.vmem %s2, 4
    %v1143 = vld [vmem:[%s1142] sm:$0xf]
    %v1145 = vlaneseq
    %v1146 = vshrl.u32 %v1145, 7
    %v1147 = vsub.s32 0, %v1146
    %v1148 = vrot.slane %v1143, %v1147
    %v1149 = vlaneseq
    %v1150 = vshrl.u32 %v1149, 7
    %v1151 = vsub.s32 1, %v1150
    %v1152 = vrot.slane %v1143, %v1151
    %v1153 = vlaneseq
    %v1154 = vshrl.u32 %v1153, 7
    %v1155 = vsub.s32 2, %v1154
    %v1156 = vrot.slane %v1143, %v1155
    %v1157 = vlaneseq
    %v1158 = vshrl.u32 %v1157, 7
    %v1159 = vsub.s32 3, %v1158
    %v1160 = vrot.slane %v1143, %v1159
    %1165 = vmatprep.subr.mxu0 %v577
    %1166 = vmatpush1.xpose.msra.mxu0 %v576
    %1167 = vmatprep.subr.mxu0 %v581
    %1168 = vmatpush1.xpose.msra.mxu0 %v580
    %1169 = vmatprep.subr.mxu0 %v585
    %1170 = vmatpush1.xpose.msra.mxu0 %v584
    %1171 = vmatprep.subr.mxu0 %v589
    %1172 = vmatpush1.xpose.msra.mxu0 %v588
    %1173 = vmatprep.subr.mxu0 %v593
    %1174 = vmatpush1.xpose.msra.mxu0 %v592
    %1175 = vmatprep.subr.mxu0 %v597
    %1176 = vmatpush1.xpose.msra.mxu0 %v596
    %1177 = vmatprep.subr.mxu0 %v601
    %1178 = vmatpush1.xpose.msra.mxu0 %v600
    %1179 = vmatprep.subr.mxu0 %v605
    %1180 = vmatpush1.xpose.msra.mxu0 %v604
    %1181 = vmatprep.subr.mxu0 %v609
    %1182 = vmatpush1.xpose.msra.mxu0 %v608
    %1183 = vmatprep.subr.mxu0 %v613
    %1184 = vmatpush1.xpose.msra.mxu0 %v612
    %1185 = vmatprep.subr.mxu0 %v617
    %1186 = vmatpush1.xpose.msra.mxu0 %v616
    %1187 = vmatprep.subr.mxu0 %v621
    %1188 = vmatpush1.xpose.msra.mxu0 %v620
    %1189 = vmatprep.subr.mxu0 %v625
    %1190 = vmatpush1.xpose.msra.mxu0 %v624
    %1191 = vmatprep.subr.mxu0 %v629
    %1192 = vmatpush1.xpose.msra.mxu0 %v628
    %1193 = vmatprep.subr.mxu0 %v633
    %1194 = vmatpush1.xpose.msra.mxu0 %v632
    %1195 = vmatprep.subr.mxu0 %v637
    %1196 = vmatpush1.xpose.msra.mxu0 %v636
    %1197 = vmatprep.subr.mxu0 %v641
    %1198 = vmatpush1.xpose.msra.mxu0 %v640
    %1199 = vmatprep.subr.mxu0 %v645
    %1200 = vmatpush1.xpose.msra.mxu0 %v644
    %1201 = vmatprep.subr.mxu0 %v649
    %1202 = vmatpush1.xpose.msra.mxu0 %v648
    %1203 = vmatprep.subr.mxu0 %v653
    %1204 = vmatpush1.xpose.msra.mxu0 %v652
    %1205 = vmatprep.subr.mxu0 %v657
    %1206 = vmatpush1.xpose.msra.mxu0 %v656
    %1207 = vmatprep.subr.mxu0 %v661
    %1208 = vmatpush1.xpose.msra.mxu0 %v660
    %1209 = vmatprep.subr.mxu0 %v665
    %1210 = vmatpush1.xpose.msra.mxu0 %v664
    %1211 = vmatprep.subr.mxu0 %v669
    %1212 = vmatpush1.xpose.msra.mxu0 %v668
    %1213 = vmatprep.subr.mxu0 %v673
    %1214 = vmatpush1.xpose.msra.mxu0 %v672
    %1215 = vmatprep.subr.mxu0 %v677
    %1216 = vmatpush1.xpose.msra.mxu0 %v676
    %1217 = vmatprep.subr.mxu0 %v681
    %1218 = vmatpush1.xpose.msra.mxu0 %v680
    %1219 = vmatprep.subr.mxu0 %v685
    %1220 = vmatpush1.xpose.msra.mxu0 %v684
    %1221 = vmatprep.subr.mxu0 %v689
    %1222 = vmatpush1.xpose.msra.mxu0 %v688
    %1223 = vmatprep.subr.mxu0 %v693
    %1224 = vmatpush1.xpose.msra.mxu0 %v692
    %1225 = vmatprep.subr.mxu0 %v697
    %1226 = vmatpush1.xpose.msra.mxu0 %v696
    %1227 = vmatprep.subr.mxu0 %v701
    %1228 = vmatpush1.xpose.msra.mxu0 %v700
    %1229 = vmatprep.mubr.f32.mxu0 %v60
    %1230 = vmatmul.mubr.f32.gmra.mrb[0].mxu0 %v59
    %v1231 = vpop.f32.mrb[0].mxu0
    %v1232 = vadd.f32 %v1148, %v1231
    %v1233 = vpop.f32.mrb[0].mxu0
    %v1234 = vadd.f32 %v1152, %v1233
    %1235 = vdwg.mxu0
    %1236 = vmatprep.subr.mxu0 %v579
    %1237 = vmatpush1.xpose.msra.mxu0 %v578
    %1238 = vmatprep.subr.mxu0 %v583
    %1239 = vmatpush1.xpose.msra.mxu0 %v582
    %1240 = vmatprep.subr.mxu0 %v587
    %1241 = vmatpush1.xpose.msra.mxu0 %v586
    %1242 = vmatprep.subr.mxu0 %v591
    %1243 = vmatpush1.xpose.msra.mxu0 %v590
    %1244 = vmatprep.subr.mxu0 %v595
    %1245 = vmatpush1.xpose.msra.mxu0 %v594
    %1246 = vmatprep.subr.mxu0 %v599
    %1247 = vmatpush1.xpose.msra.mxu0 %v598
    %1248 = vmatprep.subr.mxu0 %v603
    %1249 = vmatpush1.xpose.msra.mxu0 %v602
    %1250 = vmatprep.subr.mxu0 %v607
    %1251 = vmatpush1.xpose.msra.mxu0 %v606
    %1252 = vmatprep.subr.mxu0 %v611
    %1253 = vmatpush1.xpose.msra.mxu0 %v610
    %1254 = vmatprep.subr.mxu0 %v615
    %1255 = vmatpush1.xpose.msra.mxu0 %v614
    %1256 = vmatprep.subr.mxu0 %v619
    %1257 = vmatpush1.xpose.msra.mxu0 %v618
    %1258 = vmatprep.subr.mxu0 %v623
    %1259 = vmatpush1.xpose.msra.mxu0 %v622
    %1260 = vmatprep.subr.mxu0 %v627
    %1261 = vmatpush1.xpose.msra.mxu0 %v626
    %1262 = vmatprep.subr.mxu0 %v631
    %1263 = vmatpush1.xpose.msra.mxu0 %v630
    %1264 = vmatprep.subr.mxu0 %v635
    %1265 = vmatpush1.xpose.msra.mxu0 %v634
    %1266 = vmatprep.subr.mxu0 %v639
    %1267 = vmatpush1.xpose.msra.mxu0 %v638
    %1268 = vmatprep.subr.mxu0 %v643
    %1269 = vmatpush1.xpose.msra.mxu0 %v642
    %1270 = vmatprep.subr.mxu0 %v647
    %1271 = vmatpush1.xpose.msra.mxu0 %v646
    %1272 = vmatprep.subr.mxu0 %v651
    %1273 = vmatpush1.xpose.msra.mxu0 %v650
    %1274 = vmatprep.subr.mxu0 %v655
    %1275 = vmatpush1.xpose.msra.mxu0 %v654
    %1276 = vmatprep.subr.mxu0 %v659
    %1277 = vmatpush1.xpose.msra.mxu0 %v658
    %1278 = vmatprep.subr.mxu0 %v663
    %1279 = vmatpush1.xpose.msra.mxu0 %v662
    %1280 = vmatprep.subr.mxu0 %v667
    %1281 = vmatpush1.xpose.msra.mxu0 %v666
    %1282 = vmatprep.subr.mxu0 %v671
    %1283 = vmatpush1.xpose.msra.mxu0 %v670
    %1284 = vmatprep.subr.mxu0 %v675
    %1285 = vmatpush1.xpose.msra.mxu0 %v674
    %1286 = vmatprep.subr.mxu0 %v679
    %1287 = vmatpush1.xpose.msra.mxu0 %v678
    %1288 = vmatprep.subr.mxu0 %v683
    %1289 = vmatpush1.xpose.msra.mxu0 %v682
    %1290 = vmatprep.subr.mxu0 %v687
    %1291 = vmatpush1.xpose.msra.mxu0 %v686
    %1292 = vmatprep.subr.mxu0 %v691
    %1293 = vmatpush1.xpose.msra.mxu0 %v690
    %1294 = vmatprep.subr.mxu0 %v695
    %1295 = vmatpush1.xpose.msra.mxu0 %v694
    %1296 = vmatprep.subr.mxu0 %v699
    %1297 = vmatpush1.xpose.msra.mxu0 %v698
    %1298 = vmatprep.subr.mxu0 %v703
    %1299 = vmatpush1.xpose.msra.mxu0 %v702
    %1300 = vmatprep.mubr.f32.mxu0 %v62
    %1301 = vmatmul.mubr.f32.gmra.mrb[0].mxu0 %v61
    %v1302 = vpop.f32.mrb[0].mxu0
    %v1303 = vadd.f32 %v1232, %v1302
    %v1304 = vpop.f32.mrb[0].mxu0
    %v1305 = vadd.f32 %v1234, %v1304
    %1306 = vdwg.mxu0
    %1307 = vmatprep.subr.mxu0 %v705
    %1308 = vmatpush1.xpose.msra.mxu0 %v704
    %1309 = vmatprep.subr.mxu0 %v709
    %1310 = vmatpush1.xpose.msra.mxu0 %v708
    %1311 = vmatprep.subr.mxu0 %v713
    %1312 = vmatpush1.xpose.msra.mxu0 %v712
    %1313 = vmatprep.subr.mxu0 %v717
    %1314 = vmatpush1.xpose.msra.mxu0 %v716
    %1315 = vmatprep.subr.mxu0 %v721
    %1316 = vmatpush1.xpose.msra.mxu0 %v720
    %1317 = vmatprep.subr.mxu0 %v725
    %1318 = vmatpush1.xpose.msra.mxu0 %v724
    %1319 = vmatprep.subr.mxu0 %v729
    %1320 = vmatpush1.xpose.msra.mxu0 %v728
    %1321 = vmatprep.subr.mxu0 %v733
    %1322 = vmatpush1.xpose.msra.mxu0 %v732
    %1323 = vmatprep.subr.mxu0 %v737
    %1324 = vmatpush1.xpose.msra.mxu0 %v736
    %1325 = vmatprep.subr.mxu0 %v741
    %1326 = vmatpush1.xpose.msra.mxu0 %v740
    %1327 = vmatprep.subr.mxu0 %v745
    %1328 = vmatpush1.xpose.msra.mxu0 %v744
    %1329 = vmatprep.subr.mxu0 %v749
    %1330 = vmatpush1.xpose.msra.mxu0 %v748
    %1331 = vmatprep.subr.mxu0 %v753
    %1332 = vmatpush1.xpose.msra.mxu0 %v752
    %1333 = vmatprep.subr.mxu0 %v757
    %1334 = vmatpush1.xpose.msra.mxu0 %v756
    %1335 = vmatprep.subr.mxu0 %v761
    %1336 = vmatpush1.xpose.msra.mxu0 %v760
    %1337 = vmatprep.subr.mxu0 %v765
    %1338 = vmatpush1.xpose.msra.mxu0 %v764
    %1339 = vmatprep.subr.mxu0 %v769
    %1340 = vmatpush1.xpose.msra.mxu0 %v768
    %1341 = vmatprep.subr.mxu0 %v773
    %1342 = vmatpush1.xpose.msra.mxu0 %v772
    %1343 = vmatprep.subr.mxu0 %v777
    %1344 = vmatpush1.xpose.msra.mxu0 %v776
    %1345 = vmatprep.subr.mxu0 %v781
    %1346 = vmatpush1.xpose.msra.mxu0 %v780
    %1347 = vmatprep.subr.mxu0 %v785
    %1348 = vmatpush1.xpose.msra.mxu0 %v784
    %1349 = vmatprep.subr.mxu0 %v789
    %1350 = vmatpush1.xpose.msra.mxu0 %v788
    %1351 = vmatprep.subr.mxu0 %v793
    %1352 = vmatpush1.xpose.msra.mxu0 %v792
    %1353 = vmatprep.subr.mxu0 %v797
    %1354 = vmatpush1.xpose.msra.mxu0 %v796
    %1355 = vmatprep.subr.mxu0 %v801
    %1356 = vmatpush1.xpose.msra.mxu0 %v800
    %1357 = vmatprep.subr.mxu0 %v805
    %1358 = vmatpush1.xpose.msra.mxu0 %v804
    %1359 = vmatprep.subr.mxu0 %v809
    %1360 = vmatpush1.xpose.msra.mxu0 %v808
    %1361 = vmatprep.subr.mxu0 %v813
    %1362 = vmatpush1.xpose.msra.mxu0 %v812
    %1363 = vmatprep.subr.mxu0 %v817
    %1364 = vmatpush1.xpose.msra.mxu0 %v816
    %1365 = vmatprep.subr.mxu0 %v821
    %1366 = vmatpush1.xpose.msra.mxu0 %v820
    %1367 = vmatprep.subr.mxu0 %v825
    %1368 = vmatpush1.xpose.msra.mxu0 %v824
    %1369 = vmatprep.subr.mxu0 %v829
    %1370 = vmatpush1.xpose.msra.mxu0 %v828
    %1371 = vmatprep.mubr.f32.mxu0 %v60
    %1372 = vmatmul.mubr.f32.gmra.mrb[0].mxu0 %v59
    %v1373 = vpop.f32.mrb[0].mxu0
    %v1374 = vadd.f32 %v1156, %v1373
    %v1375 = vpop.f32.mrb[0].mxu0
    %v1376 = vadd.f32 %v1160, %v1375
    %1377 = vdwg.mxu0
    %1378 = vmatprep.subr.mxu0 %v707
    %1379 = vmatpush1.xpose.msra.mxu0 %v706
    %1380 = vmatprep.subr.mxu0 %v711
    %1381 = vmatpush1.xpose.msra.mxu0 %v710
    %1382 = vmatprep.subr.mxu0 %v715
    %1383 = vmatpush1.xpose.msra.mxu0 %v714
    %1384 = vmatprep.subr.mxu0 %v719
    %1385 = vmatpush1.xpose.msra.mxu0 %v718
    %1386 = vmatprep.subr.mxu0 %v723
    %1387 = vmatpush1.xpose.msra.mxu0 %v722
    %1388 = vmatprep.subr.mxu0 %v727
    %1389 = vmatpush1.xpose.msra.mxu0 %v726
    %1390 = vmatprep.subr.mxu0 %v731
    %1391 = vmatpush1.xpose.msra.mxu0 %v730
    %1392 = vmatprep.subr.mxu0 %v735
    %1393 = vmatpush1.xpose.msra.mxu0 %v734
    %1394 = vmatprep.subr.mxu0 %v739
    %1395 = vmatpush1.xpose.msra.mxu0 %v738
    %1396 = vmatprep.subr.mxu0 %v743
    %1397 = vmatpush1.xpose.msra.mxu0 %v742
    %1398 = vmatprep.subr.mxu0 %v747
    %1399 = vmatpush1.xpose.msra.mxu0 %v746
    %1400 = vmatprep.subr.mxu0 %v751
    %1401 = vmatpush1.xpose.msra.mxu0 %v750
    %1402 = vmatprep.subr.mxu0 %v755
    %1403 = vmatpush1.xpose.msra.mxu0 %v754
    %1404 = vmatprep.subr.mxu0 %v759
    %1405 = vmatpush1.xpose.msra.mxu0 %v758
    %1406 = vmatprep.subr.mxu0 %v763
    %1407 = vmatpush1.xpose.msra.mxu0 %v762
    %1408 = vmatprep.subr.mxu0 %v767
    %1409 = vmatpush1.xpose.msra.mxu0 %v766
    %1410 = vmatprep.subr.mxu0 %v771
    %1411 = vmatpush1.xpose.msra.mxu0 %v770
    %1412 = vmatprep.subr.mxu0 %v775
    %1413 = vmatpush1.xpose.msra.mxu0 %v774
    %1414 = vmatprep.subr.mxu0 %v779
    %1415 = vmatpush1.xpose.msra.mxu0 %v778
    %1416 = vmatprep.subr.mxu0 %v783
    %1417 = vmatpush1.xpose.msra.mxu0 %v782
    %1418 = vmatprep.subr.mxu0 %v787
    %1419 = vmatpush1.xpose.msra.mxu0 %v786
    %1420 = vmatprep.subr.mxu0 %v791
    %1421 = vmatpush1.xpose.msra.mxu0 %v790
    %1422 = vmatprep.subr.mxu0 %v795
    %1423 = vmatpush1.xpose.msra.mxu0 %v794
    %1424 = vmatprep.subr.mxu0 %v799
    %1425 = vmatpush1.xpose.msra.mxu0 %v798
    %1426 = vmatprep.subr.mxu0 %v803
    %1427 = vmatpush1.xpose.msra.mxu0 %v802
    %1428 = vmatprep.subr.mxu0 %v807
    %1429 = vmatpush1.xpose.msra.mxu0 %v806
    %1430 = vmatprep.subr.mxu0 %v811
    %1431 = vmatpush1.xpose.msra.mxu0 %v810
    %1432 = vmatprep.subr.mxu0 %v815
    %1433 = vmatpush1.xpose.msra.mxu0 %v814
    %1434 = vmatprep.subr.mxu0 %v819
    %1435 = vmatpush1.xpose.msra.mxu0 %v818
    %1436 = vmatprep.subr.mxu0 %v823
    %1437 = vmatpush1.xpose.msra.mxu0 %v822
    %1438 = vmatprep.subr.mxu0 %v827
    %1439 = vmatpush1.xpose.msra.mxu0 %v826
    %1440 = vmatprep.subr.mxu0 %v831
    %1441 = vmatpush1.xpose.msra.mxu0 %v830
    %1442 = vmatprep.mubr.f32.mxu0 %v62
    %1443 = vmatmul.mubr.f32.gmra.mrb[0].mxu0 %v61
    %v1444 = vpop.f32.mrb[0].mxu0
    %v1445 = vadd.f32 %v1374, %v1444
    %v1446 = vpop.f32.mrb[0].mxu0
    %v1447 = vadd.f32 %v1376, %v1446
    %1448 = vdwg.mxu0
    %v1449 = vmax.f32 %v1303, 0.0
    %v1450 = vmax.f32 %v1305, 0.0
    %v1451 = vmax.f32 %v1445, 0.0
    %v1452 = vmax.f32 %v1447, 0.0
    %v1453 = vld [vmem:[#allocation7] sm:$0xff]
    %v1454 = vld [vmem:[#allocation7 + $0x8] sm:$0xff]
    %v1455 = vld [vmem:[#allocation7 + $0x10] sm:$0xff]
    %v1456 = vld [vmem:[#allocation7 + $0x18] sm:$0xff]
    %v1457 = vmul.f32 %v1449, 0.5
    %v1458 = vmul.f32 %v1450, 0.5
    %v1459 = vmul.f32 %v1451, 0.5
    %v1460 = vmul.f32 %v1452, 0.5
    %v1461 = vmul.f32 %v1457, 1.442695
    %v1462 = vpow.pop %v1461
    %v1463 = vmul.f32 %v1458, 1.442695
    %v1464 = vpow.pop %v1463
    %v1465 = vmul.f32 %v1459, 1.442695
    %v1466 = vpow.pop %v1465
    %v1467 = vmul.f32 %v1460, 1.442695
    %v1468 = vpow.pop %v1467
    %v1469 = vmul.f32 %v1453, %v1462
    %v1470 = vmul.f32 %v1454, %v1464
    %v1471 = vmul.f32 %v1455, %v1466
    %v1472 = vmul.f32 %v1456, %v1468
    %v1473 = vadd.f32 %v1469, %v1138
    %v1474 = vadd.f32 %v1470, %v1139
    %v1475 = vadd.f32 %v1471, %v1140
    %v1476 = vadd.f32 %v1472, %v1141
    %1477 = vst [vmem:[#allocation8] sm:$0xff] %v1473
    %1478 = vst [vmem:[#allocation8 + $0x8] sm:$0xff] %v1474
    %1479 = vst [vmem:[#allocation8 + $0x10] sm:$0xff] %v1475
    %1480 = vst [vmem:[#allocation8 + $0x18] sm:$0xff] %v1476
    %1481 = vst [vmem:[#allocation9] sm:$0xff] %v1138
    %1482 = vst [vmem:[#allocation9 + $0x8] sm:$0xff] %v1139
    %1483 = vst [vmem:[#allocation9 + $0x10] sm:$0xff] %v1140
    %1484 = vst [vmem:[#allocation9 + $0x18] sm:$0xff] %v1141
    %1485 = vst [vmem:[#allocation11] sm:$0xff] %v1449
    %1486 = vst [vmem:[#allocation11 + $0x8] sm:$0xff] %v1450
    %1487 = vst [vmem:[#allocation11 + $0x10] sm:$0xff] %v1451
    %1488 = vst [vmem:[#allocation11 + $0x18] sm:$0xff] %v1452
    // Predicated region
    $region30: #{ca_net_forward.1} parent=1 // pred_check
      _
    $region31: #{ca_net_forward.1} parent=1 // pred_check_branch
      %1490 = sbr.rel (0) target = $region33
    $region32: #{ca_net_forward.1} parent=1 // pred_region
      %s1492 = ssub.s32 512, 512
      %1493 = vsyncadd [#allocation4], %s1492
      %s1495 = sshll.u32 [#allocation8], 4
      %s1496 = int_to_ptr.vmem [resolvable:$true] %s1495
      %1498 = dma.vmem_to_hbm [thread:$0]  %s1496, 512, %s4, [#allocation4]
    $region33: #{ca_net_forward.1} parent=1 // pred_fallthru
      _
    // Predicated region
    $region34: #{ca_net_forward.1} parent=1 // pred_check
      _
    $region35: #{ca_net_forward.1} parent=1 // pred_check_branch
      %1500 = sbr.rel (0) target = $region37
    $region36: #{ca_net_forward.1} parent=1 // pred_region
      %s1502 = ssub.s32 512, 512
      %1503 = vsyncadd [#allocation10], %s1502
      %s1505 = sshll.u32 [#allocation9], 4
      %s1506 = int_to_ptr.vmem [resolvable:$true] %s1505
      %1508 = dma.vmem_to_hbm [thread:$0]  %s1506, 512, %s5, [#allocation10]
    $region37: #{ca_net_forward.1} parent=1 // pred_fallthru
      _
    // Predicated region
    $region38: #{ca_net_forward.1} parent=1 // pred_check
      _
    $region39: #{ca_net_forward.1} parent=1 // pred_check_branch
      %1510 = sbr.rel (0) target = $region41
    $region40: #{ca_net_forward.1} parent=1 // pred_region
      %s1512 = ssub.s32 512, 512
      %1513 = vsyncadd [#allocation10], %s1512
      %s1515 = sshll.u32 [#allocation11], 4
      %s1516 = int_to_ptr.vmem [resolvable:$true] %s1515
      %1518 = dma.vmem_to_hbm [thread:$0]  %s1516, 512, %s6, [#allocation10]
    $region41: #{ca_net_forward.1} parent=1 // pred_fallthru
      _
    // Predicated region
    $region42: #{ca_net_forward.1} parent=1 // pred_check
      _
    $region43: #{ca_net_forward.1} parent=1 // pred_check_branch
      %1520 = sbr.rel (0) target = $region45
    $region44: #{ca_net_forward.1} parent=1 // pred_region
      %1521 = dma.done [#allocation4], 512
    $region45: #{ca_net_forward.1} parent=1 // pred_fallthru
      _
    // Predicated region
    $region46: #{ca_net_forward.1} parent=1 // pred_check
      _
    $region47: #{ca_net_forward.1} parent=1 // pred_check_branch
      %1523 = sbr.rel (0) target = $region49
    $region48: #{ca_net_forward.1} parent=1 // pred_region
      %1524 = dma.done [#allocation10], 512
    $region49: #{ca_net_forward.1} parent=1 // pred_fallthru
      _
    // Predicated region
    $region50: #{ca_net_forward.1} parent=1 // pred_check
      _
    $region51: #{ca_net_forward.1} parent=1 // pred_check_branch
      %1526 = sbr.rel (0) target = $region53
    $region52: #{ca_net_forward.1} parent=1 // pred_region
      %1527 = dma.done [#allocation10], 512
    $region53: #{ca_net_forward.1} parent=1 // pred_fallthru
      _
    %1528 = vsyncpa [#allocation3], 1
    %1529 = vsyncpa [#allocation6], 1
    %1530 = vsyncpa [#allocation4], 1
    %1531 = vsyncpa [#allocation10], 1

</llo_original>
